<compile_context>
chip_gen: v6e
topology: v6e:2x2x1
jax: 0.10.0
libtpu: 0.0.40
codegen_flags: <defaults>
</compile_context>

<pallas_src>
import functools

import jax
import jax.numpy as jnp
from jax.experimental import pallas as pl
from jax.experimental.pallas import tpu as pltpu

EPS = 1e-5
LANE = 128


def _round_up(n, m):
    return ((n + m - 1) // m) * m


def _pad2(a, rows, cols):
    return jnp.pad(a, ((0, rows - a.shape[0]), (0, cols - a.shape[1])))


# ------------------------------- kernel -----------------------------------

def _gcn_gnn_kernel(adj_ref, x_ref,
                    w1_ref, g1_ref, be1_ref,
                    w2_ref, g2_ref, be2_ref,
                    w3_ref, g3_ref, be3_ref,
                    w4_ref,
                    wf_ref, bf_ref,
                    out_ref, *, inv_n):
    """Fused 4-layer GCN + BatchNorm + ReLU + final Linear, all in VMEM.

    adj / x / weights arrive in bf16 (MXU operands); accumulation and all
    BatchNorm math is f32.  inv_n = 1 / (real node count): padded node rows of
    every conv output are exactly zero (adjacency rows/cols outside the real
    graph are zero), so sums over the padded array divided by the real N give
    the correct batch statistics.
    """
    adj = adj_ref[...]          # bf16 [N_pad, N_pad] -- loaded once, reused 4x
    h = x_ref[...]              # bf16 [N_pad, F_pad]

    def gcn_conv(h_bf16, w_ref):
        # GCNConv (bias dropped -- exactly cancelled by BN mean subtraction):
        #   A_hat @ (H @ W)   -- two MXU matmuls, bf16 operands, f32 accumulate.
        hw = jnp.dot(h_bf16, w_ref[...], preferred_element_type=jnp.float32)
        return jnp.dot(adj, hw.astype(jnp.bfloat16),
                       preferred_element_type=jnp.float32)

    def bn_stats(z):
        # Single-pass batch statistics over the node axis (biased variance,
        # as PyTorch BatchNorm uses for normalization).
        s = jnp.sum(z, axis=0, keepdims=True)
        sq = jnp.sum(z * z, axis=0, keepdims=True)
        mean = s * inv_n
        var = jnp.maximum(sq * inv_n - mean * mean, 0.0)
        return mean, jax.lax.rsqrt(var + EPS)

    # Layers 1..3: conv -> BN -> ReLU (BN affine fused into one scale/shift).
    for w_ref, g_ref, be_ref in ((w1_ref, g1_ref, be1_ref),
                                 (w2_ref, g2_ref, be2_ref),
                                 (w3_ref, g3_ref, be3_ref)):
        z = gcn_conv(h, w_ref)                       # f32 [N_pad, F_pad]
        mean, rstd = bn_stats(z)
        scale = rstd * g_ref[...]
        shift = be_ref[...] - mean * scale
        h = jnp.maximum(z * scale + shift, 0.0).astype(jnp.bfloat16)

    # Layer 4: conv -> BN normalization only (gamma/beta folded into Linear).
    z = gcn_conv(h, w4_ref)
    mean, rstd = bn_stats(z)
    hn = ((z - mean) * rstd).astype(jnp.bfloat16)

    # Final Linear (gamma4/beta4 already folded into wf/bf in the wrapper).
    out_ref[...] = jnp.dot(hn, wf_ref[...],
                           preferred_element_type=jnp.float32) + bf_ref[...]


# ------------------------------- wrapper -----------------------------------

def gnn_forward(adj_norm, x, params):
    """Calls the fused Pallas kernel. adj_norm: [N,N] f32, x: [N,F_in] f32."""
    (w1, b1, g1, be1, w2, b2, g2, be2,
     w3, b3, g3, be3, w4, b4, g4, be4, wf, bf) = params
    del b1, b2, b3, b4  # conv biases are exactly cancelled by batch-stat BN

    N, f_in = x.shape
    hidden = w1.shape[1]
    out_dim = wf.shape[1]
    assert max(f_in, hidden, out_dim) <= LANE

    n_pad = _round_up(N, LANE)   # lane-dense adjacency, sublane-aligned rows
    f_pad = LANE                 # every feature dim fits one 128-lane tile

    # Wrapper-side constant folding: layer-4 BN affine into the final Linear.
    #   (hn * g4 + be4) @ wf + bf  ==  hn @ (diag(g4) @ wf) + (be4 @ wf + bf)
    wf_fold = wf * g4.reshape(-1, 1)
    bf_fold = be4 @ wf + bf

    def to_bf16(a, r, c):
        return _pad2(a, r, c).astype(jnp.bfloat16)

    def to_f32(a, r, c):
        return _pad2(a, r, c).astype(jnp.float32)

    inputs = [
        to_bf16(adj_norm, n_pad, n_pad),
        to_bf16(x, n_pad, f_pad),
        to_bf16(w1, f_pad, f_pad), to_f32(g1, 1, f_pad), to_f32(be1, 1, f_pad),
        to_bf16(w2, f_pad, f_pad), to_f32(g2, 1, f_pad), to_f32(be2, 1, f_pad),
        to_bf16(w3, f_pad, f_pad), to_f32(g3, 1, f_pad), to_f32(be3, 1, f_pad),
        to_bf16(w4, f_pad, f_pad),
        to_bf16(wf_fold, f_pad, f_pad), to_f32(bf_fold, 1, f_pad),
    ]

    kernel = functools.partial(_gcn_gnn_kernel, inv_n=1.0 / N)

    out_pad = pl.pallas_call(
        kernel,
        grid=(1,),
        in_specs=[pl.BlockSpec(a.shape, lambda i: (0, 0)) for a in inputs],
        out_specs=pl.BlockSpec((n_pad, f_pad), lambda i: (0, 0)),
        out_shape=jax.ShapeDtypeStruct((n_pad, f_pad), jnp.float32),
        compiler_params=pltpu.CompilerParams(
            dimension_semantics=("arbitrary",)),
    )(*inputs)

    return out_pad[:N, :out_dim]


# ------------------------- glue / parameter setup -------------------------

def gcn_normalized_adj(edge_index, num_nodes):
    """Dense A_hat = D^-1/2 (A + self-loops) D^-1/2 (PyG add_remaining_self_loops)."""
    src, dst = edge_index
    A = jnp.zeros((num_nodes, num_nodes), jnp.float32).at[dst, src].set(1.0)
    A = jnp.maximum(A, jnp.eye(num_nodes, dtype=jnp.float32))
    deg = A.sum(axis=1)
    dinv = jax.lax.rsqrt(deg)
    return A * dinv[:, None] * dinv[None, :]


def init_params(key, input_dim, hidden_dim, output_dim):
    """Deterministic synthetic init matching the PyTorch module defaults.

    GCNConv: glorot-uniform weight, zero bias.  BatchNorm: gamma=1, beta=0.
    Final Linear: uniform(+-1/sqrt(fan_in)).
    """
    dims = [(input_dim, hidden_dim),
            (hidden_dim, hidden_dim),
            (hidden_dim, hidden_dim),
            (hidden_dim, output_dim)]
    params = []
    for (fi, fo) in dims:
        key, kw = jax.random.split(key)
        scale = float(jnp.sqrt(6.0 / (fi + fo)))
        w = jax.random.uniform(kw, (fi, fo), jnp.float32, -scale, scale)
        b = jnp.zeros((1, fo), jnp.float32)       # GCNConv bias
        g = jnp.ones((1, fo), jnp.float32)        # BN gamma
        be = jnp.zeros((1, fo), jnp.float32)      # BN beta
        params += [w, b, g, be]
    key, kwf, kbf = jax.random.split(key, 3)
    scale = 1.0 / float(jnp.sqrt(output_dim))
    wf = jax.random.uniform(kwf, (output_dim, output_dim), jnp.float32, -scale, scale)
    bf = jax.random.uniform(kbf, (1, output_dim), jnp.float32, -scale, scale)
    params += [wf, bf]
    return params


def reference_forward(adj_norm, x, params, bf16_matmul=False):
    """Pure-JAX reference (the literal module forward).

    bf16_matmul=True mimics the kernel's bf16 matmul operands (f32 accumulate)
    so the kernel can be checked with a tight tolerance.
    """
    (w1, b1, g1, be1, w2, b2, g2, be2,
     w3, b3, g3, be3, w4, b4, g4, be4, wf, bf) = params

    def mm(a, b):
        if bf16_matmul:
            return jnp.dot(a.astype(jnp.bfloat16), b.astype(jnp.bfloat16),
                           preferred_element_type=jnp.float32)
        return jnp.dot(a, b, preferred_element_type=jnp.float32)

    def conv(h, w, b):
        return mm(adj_norm, mm(h, w)) + b

    def bn(h, g, be):
        m = h.mean(axis=0, keepdims=True)
        v = ((h - m) ** 2).mean(axis=0, keepdims=True)
        return (h - m) / jnp.sqrt(v + EPS) * g + be

    h = x
    for (w, b, g, be) in [(w1, b1, g1, be1), (w2, b2, g2, be2), (w3, b3, g3, be3)]:
        h = jnp.maximum(bn(conv(h, w, b), g, be), 0.0)
    h = bn(conv(h, w4, b4), g4, be4)
    return mm(h, wf) + bf


if __name__ == "__main__":
    # Small synthetic graph: N=16 nodes, input_dim=8, hidden_dim=32, output_dim=8.
    N, E = 16, 40
    input_dim, hidden_dim, output_dim = 8, 32, 8

    key = jax.random.PRNGKey(0)
    k_src, k_dst, k_x, k_p = jax.random.split(key, 4)

    src = jax.random.randint(k_src, (E,), 0, N)
    dst = jax.random.randint(k_dst, (E,), 0, N)
    # symmetric edge_index [2, 2E] (undirected graph, as GCN assumes)
    edge_index = jnp.stack([jnp.concatenate([src, dst]),
                            jnp.concatenate([dst, src])], axis=0)

    x = jax.random.normal(k_x, (N, input_dim), jnp.float32)
    params = init_params(k_p, input_dim, hidden_dim, output_dim)
    adj_norm = gcn_normalized_adj(edge_index, N)

    out = jax.block_until_ready(gnn_forward(adj_norm, x, params))

    ref_bf16 = jax.block_until_ready(
        reference_forward(adj_norm, x, params, bf16_matmul=True))
    ref_f32 = jax.block_until_ready(
        reference_forward(adj_norm, x, params, bf16_matmul=False))

    assert out.shape == (N, output_dim)
    assert bool(jnp.all(jnp.isfinite(out)))
    # Tight check vs. a reference using the same bf16 matmul operands.
    assert bool(jnp.allclose(out, ref_bf16, atol=5e-3, rtol=5e-3)), \
        "mismatch vs bf16-matched JAX reference"
    # Loose check vs. the full-f32 reference (bf16 operand rounding only).
    assert bool(jnp.allclose(out, ref_f32, atol=1e-1, rtol=1e-1)), \
        "mismatch vs f32 JAX reference"

    print("KERNEL_OK")
</pallas_src>

<mosaic_0001>
module attributes {stable_mosaic.version = 11 : i64} {
  func.func @_gcn_gnn_kernel(%arg0: i32, %arg1: memref<128x128xbf16, #tpu.memory_space<vmem>>, %arg2: memref<128x128xbf16, #tpu.memory_space<vmem>>, %arg3: memref<128x128xbf16, #tpu.memory_space<vmem>>, %arg4: memref<1x128xf32, #tpu.memory_space<vmem>>, %arg5: memref<1x128xf32, #tpu.memory_space<vmem>>, %arg6: memref<128x128xbf16, #tpu.memory_space<vmem>>, %arg7: memref<1x128xf32, #tpu.memory_space<vmem>>, %arg8: memref<1x128xf32, #tpu.memory_space<vmem>>, %arg9: memref<128x128xbf16, #tpu.memory_space<vmem>>, %arg10: memref<1x128xf32, #tpu.memory_space<vmem>>, %arg11: memref<1x128xf32, #tpu.memory_space<vmem>>, %arg12: memref<128x128xbf16, #tpu.memory_space<vmem>>, %arg13: memref<128x128xbf16, #tpu.memory_space<vmem>>, %arg14: memref<1x128xf32, #tpu.memory_space<vmem>>, %arg15: memref<128x128xf32, #tpu.memory_space<vmem>>) attributes {dimension_semantics = [#tpu.dimension_semantics<arbitrary>], iteration_bounds = array<i64: 1>, scalar_prefetch = 0 : i64, scratch_operands = 0 : i64, tpu.core_type = #tpu.core_type<tc>, window_params = [{pipeline_mode = #tpu.pipeline_mode<synchronous>, transform_indices = @transform_0, window_bounds = array<i64: 128, 128>}, {pipeline_mode = #tpu.pipeline_mode<synchronous>, transform_indices = @transform_1, window_bounds = array<i64: 128, 128>}, {pipeline_mode = #tpu.pipeline_mode<synchronous>, transform_indices = @transform_2, window_bounds = array<i64: 128, 128>}, {pipeline_mode = #tpu.pipeline_mode<synchronous>, transform_indices = @transform_3, window_bounds = array<i64: 1, 128>}, {pipeline_mode = #tpu.pipeline_mode<synchronous>, transform_indices = @transform_4, window_bounds = array<i64: 1, 128>}, {pipeline_mode = #tpu.pipeline_mode<synchronous>, transform_indices = @transform_5, window_bounds = array<i64: 128, 128>}, {pipeline_mode = #tpu.pipeline_mode<synchronous>, transform_indices = @transform_6, window_bounds = array<i64: 1, 128>}, {pipeline_mode = #tpu.pipeline_mode<synchronous>, transform_indices = @transform_7, window_bounds = array<i64: 1, 128>}, {pipeline_mode = #tpu.pipeline_mode<synchronous>, transform_indices = @transform_8, window_bounds = array<i64: 128, 128>}, {pipeline_mode = #tpu.pipeline_mode<synchronous>, transform_indices = @transform_9, window_bounds = array<i64: 1, 128>}, {pipeline_mode = #tpu.pipeline_mode<synchronous>, transform_indices = @transform_10, window_bounds = array<i64: 1, 128>}, {pipeline_mode = #tpu.pipeline_mode<synchronous>, transform_indices = @transform_11, window_bounds = array<i64: 128, 128>}, {pipeline_mode = #tpu.pipeline_mode<synchronous>, transform_indices = @transform_12, window_bounds = array<i64: 128, 128>}, {pipeline_mode = #tpu.pipeline_mode<synchronous>, transform_indices = @transform_13, window_bounds = array<i64: 1, 128>}, {pipeline_mode = #tpu.pipeline_mode<synchronous>, transform_indices = @transform_14, window_bounds = array<i64: 128, 128>}]} {
    %c0 = arith.constant 0 : index
    %c0_0 = arith.constant 0 : index
    %0 = vector.load %arg1[%c0, %c0_0] : memref<128x128xbf16, #tpu.memory_space<vmem>>, vector<128x128xbf16>
    %c0_1 = arith.constant 0 : index
    %c0_2 = arith.constant 0 : index
    %1 = vector.load %arg2[%c0_1, %c0_2] : memref<128x128xbf16, #tpu.memory_space<vmem>>, vector<128x128xbf16>
    %c0_3 = arith.constant 0 : index
    %c0_4 = arith.constant 0 : index
    %2 = vector.load %arg3[%c0_3, %c0_4] : memref<128x128xbf16, #tpu.memory_space<vmem>>, vector<128x128xbf16>
    %cst = arith.constant dense<0.000000e+00> : vector<128x128xf32>
    %3 = tpu.matmul %1, %2, %cst {dimension_numbers = #tpu.dot_dimension_numbers<[1], [0], [0], [1], [0, 0, 1, 1], [], []>} : vector<128x128xbf16>, vector<128x128xbf16>, vector<128x128xf32> -> vector<128x128xf32>
    %4 = arith.truncf %3 : vector<128x128xf32> to vector<128x128xbf16>
    %cst_5 = arith.constant dense<0.000000e+00> : vector<128x128xf32>
    %5 = tpu.matmul %0, %4, %cst_5 {dimension_numbers = #tpu.dot_dimension_numbers<[1], [0], [0], [1], [0, 0, 1, 1], [], []>} : vector<128x128xbf16>, vector<128x128xbf16>, vector<128x128xf32> -> vector<128x128xf32>
    %cst_6 = arith.constant dense<0.000000e+00> : vector<128xf32>
    %6 = vector.multi_reduction <add>, %5, %cst_6 [0] : vector<128x128xf32> to vector<128xf32>
    %7 = vector.shape_cast %6 : vector<128xf32> to vector<1x128xf32>
    %8 = arith.mulf %5, %5 : vector<128x128xf32>
    %cst_7 = arith.constant dense<0.000000e+00> : vector<128xf32>
    %9 = vector.multi_reduction <add>, %8, %cst_7 [0] : vector<128x128xf32> to vector<128xf32>
    %10 = vector.shape_cast %9 : vector<128xf32> to vector<1x128xf32>
    %cst_8 = arith.constant 6.250000e-02 : f32
    %11 = vector.broadcast %cst_8 : f32 to vector<1x128xf32>
    %12 = arith.mulf %7, %11 : vector<1x128xf32>
    %cst_9 = arith.constant 6.250000e-02 : f32
    %13 = vector.broadcast %cst_9 : f32 to vector<1x128xf32>
    %14 = arith.mulf %10, %13 : vector<1x128xf32>
    %15 = arith.mulf %12, %12 : vector<1x128xf32>
    %16 = arith.subf %14, %15 : vector<1x128xf32>
    %cst_10 = arith.constant 0.000000e+00 : f32
    %17 = vector.broadcast %cst_10 : f32 to vector<1x128xf32>
    %18 = arith.maximumf %16, %17 : vector<1x128xf32>
    %cst_11 = arith.constant 9.99999974E-6 : f32
    %19 = vector.broadcast %cst_11 : f32 to vector<1x128xf32>
    %20 = arith.addf %18, %19 : vector<1x128xf32>
    %21 = math.rsqrt %20 : vector<1x128xf32>
    %c0_12 = arith.constant 0 : index
    %c0_13 = arith.constant 0 : index
    %22 = vector.load %arg4[%c0_12, %c0_13] : memref<1x128xf32, #tpu.memory_space<vmem>>, vector<1x128xf32>
    %23 = arith.mulf %21, %22 : vector<1x128xf32>
    %c0_14 = arith.constant 0 : index
    %c0_15 = arith.constant 0 : index
    %24 = vector.load %arg5[%c0_14, %c0_15] : memref<1x128xf32, #tpu.memory_space<vmem>>, vector<1x128xf32>
    %25 = arith.mulf %12, %23 : vector<1x128xf32>
    %26 = arith.subf %24, %25 : vector<1x128xf32>
    %27 = vector.broadcast %23 : vector<1x128xf32> to vector<128x128xf32>
    %28 = arith.mulf %5, %27 : vector<128x128xf32>
    %29 = vector.broadcast %26 : vector<1x128xf32> to vector<128x128xf32>
    %30 = arith.addf %28, %29 : vector<128x128xf32>
    %cst_16 = arith.constant 0.000000e+00 : f32
    %31 = vector.broadcast %cst_16 : f32 to vector<128x128xf32>
    %32 = arith.maximumf %30, %31 : vector<128x128xf32>
    %33 = arith.truncf %32 : vector<128x128xf32> to vector<128x128xbf16>
    %c0_17 = arith.constant 0 : index
    %c0_18 = arith.constant 0 : index
    %34 = vector.load %arg6[%c0_17, %c0_18] : memref<128x128xbf16, #tpu.memory_space<vmem>>, vector<128x128xbf16>
    %cst_19 = arith.constant dense<0.000000e+00> : vector<128x128xf32>
    %35 = tpu.matmul %33, %34, %cst_19 {dimension_numbers = #tpu.dot_dimension_numbers<[1], [0], [0], [1], [0, 0, 1, 1], [], []>} : vector<128x128xbf16>, vector<128x128xbf16>, vector<128x128xf32> -> vector<128x128xf32>
    %36 = arith.truncf %35 : vector<128x128xf32> to vector<128x128xbf16>
    %cst_20 = arith.constant dense<0.000000e+00> : vector<128x128xf32>
    %37 = tpu.matmul %0, %36, %cst_20 {dimension_numbers = #tpu.dot_dimension_numbers<[1], [0], [0], [1], [0, 0, 1, 1], [], []>} : vector<128x128xbf16>, vector<128x128xbf16>, vector<128x128xf32> -> vector<128x128xf32>
    %cst_21 = arith.constant dense<0.000000e+00> : vector<128xf32>
    %38 = vector.multi_reduction <add>, %37, %cst_21 [0] : vector<128x128xf32> to vector<128xf32>
    %39 = vector.shape_cast %38 : vector<128xf32> to vector<1x128xf32>
    %40 = arith.mulf %37, %37 : vector<128x128xf32>
    %cst_22 = arith.constant dense<0.000000e+00> : vector<128xf32>
    %41 = vector.multi_reduction <add>, %40, %cst_22 [0] : vector<128x128xf32> to vector<128xf32>
    %42 = vector.shape_cast %41 : vector<128xf32> to vector<1x128xf32>
    %cst_23 = arith.constant 6.250000e-02 : f32
    %43 = vector.broadcast %cst_23 : f32 to vector<1x128xf32>
    %44 = arith.mulf %39, %43 : vector<1x128xf32>
    %cst_24 = arith.constant 6.250000e-02 : f32
    %45 = vector.broadcast %cst_24 : f32 to vector<1x128xf32>
    %46 = arith.mulf %42, %45 : vector<1x128xf32>
    %47 = arith.mulf %44, %44 : vector<1x128xf32>
    %48 = arith.subf %46, %47 : vector<1x128xf32>
    %cst_25 = arith.constant 0.000000e+00 : f32
    %49 = vector.broadcast %cst_25 : f32 to vector<1x128xf32>
    %50 = arith.maximumf %48, %49 : vector<1x128xf32>
    %cst_26 = arith.constant 9.99999974E-6 : f32
    %51 = vector.broadcast %cst_26 : f32 to vector<1x128xf32>
    %52 = arith.addf %50, %51 : vector<1x128xf32>
    %53 = math.rsqrt %52 : vector<1x128xf32>
    %c0_27 = arith.constant 0 : index
    %c0_28 = arith.constant 0 : index
    %54 = vector.load %arg7[%c0_27, %c0_28] : memref<1x128xf32, #tpu.memory_space<vmem>>, vector<1x128xf32>
    %55 = arith.mulf %53, %54 : vector<1x128xf32>
    %c0_29 = arith.constant 0 : index
    %c0_30 = arith.constant 0 : index
    %56 = vector.load %arg8[%c0_29, %c0_30] : memref<1x128xf32, #tpu.memory_space<vmem>>, vector<1x128xf32>
    %57 = arith.mulf %44, %55 : vector<1x128xf32>
    %58 = arith.subf %56, %57 : vector<1x128xf32>
    %59 = vector.broadcast %55 : vector<1x128xf32> to vector<128x128xf32>
    %60 = arith.mulf %37, %59 : vector<128x128xf32>
    %61 = vector.broadcast %58 : vector<1x128xf32> to vector<128x128xf32>
    %62 = arith.addf %60, %61 : vector<128x128xf32>
    %cst_31 = arith.constant 0.000000e+00 : f32
    %63 = vector.broadcast %cst_31 : f32 to vector<128x128xf32>
    %64 = arith.maximumf %62, %63 : vector<128x128xf32>
    %65 = arith.truncf %64 : vector<128x128xf32> to vector<128x128xbf16>
    %c0_32 = arith.constant 0 : index
    %c0_33 = arith.constant 0 : index
    %66 = vector.load %arg9[%c0_32, %c0_33] : memref<128x128xbf16, #tpu.memory_space<vmem>>, vector<128x128xbf16>
    %cst_34 = arith.constant dense<0.000000e+00> : vector<128x128xf32>
    %67 = tpu.matmul %65, %66, %cst_34 {dimension_numbers = #tpu.dot_dimension_numbers<[1], [0], [0], [1], [0, 0, 1, 1], [], []>} : vector<128x128xbf16>, vector<128x128xbf16>, vector<128x128xf32> -> vector<128x128xf32>
    %68 = arith.truncf %67 : vector<128x128xf32> to vector<128x128xbf16>
    %cst_35 = arith.constant dense<0.000000e+00> : vector<128x128xf32>
    %69 = tpu.matmul %0, %68, %cst_35 {dimension_numbers = #tpu.dot_dimension_numbers<[1], [0], [0], [1], [0, 0, 1, 1], [], []>} : vector<128x128xbf16>, vector<128x128xbf16>, vector<128x128xf32> -> vector<128x128xf32>
    %cst_36 = arith.constant dense<0.000000e+00> : vector<128xf32>
    %70 = vector.multi_reduction <add>, %69, %cst_36 [0] : vector<128x128xf32> to vector<128xf32>
    %71 = vector.shape_cast %70 : vector<128xf32> to vector<1x128xf32>
    %72 = arith.mulf %69, %69 : vector<128x128xf32>
    %cst_37 = arith.constant dense<0.000000e+00> : vector<128xf32>
    %73 = vector.multi_reduction <add>, %72, %cst_37 [0] : vector<128x128xf32> to vector<128xf32>
    %74 = vector.shape_cast %73 : vector<128xf32> to vector<1x128xf32>
    %cst_38 = arith.constant 6.250000e-02 : f32
    %75 = vector.broadcast %cst_38 : f32 to vector<1x128xf32>
    %76 = arith.mulf %71, %75 : vector<1x128xf32>
    %cst_39 = arith.constant 6.250000e-02 : f32
    %77 = vector.broadcast %cst_39 : f32 to vector<1x128xf32>
    %78 = arith.mulf %74, %77 : vector<1x128xf32>
    %79 = arith.mulf %76, %76 : vector<1x128xf32>
    %80 = arith.subf %78, %79 : vector<1x128xf32>
    %cst_40 = arith.constant 0.000000e+00 : f32
    %81 = vector.broadcast %cst_40 : f32 to vector<1x128xf32>
    %82 = arith.maximumf %80, %81 : vector<1x128xf32>
    %cst_41 = arith.constant 9.99999974E-6 : f32
    %83 = vector.broadcast %cst_41 : f32 to vector<1x128xf32>
    %84 = arith.addf %82, %83 : vector<1x128xf32>
    %85 = math.rsqrt %84 : vector<1x128xf32>
    %c0_42 = arith.constant 0 : index
    %c0_43 = arith.constant 0 : index
    %86 = vector.load %arg10[%c0_42, %c0_43] : memref<1x128xf32, #tpu.memory_space<vmem>>, vector<1x128xf32>
    %87 = arith.mulf %85, %86 : vector<1x128xf32>
    %c0_44 = arith.constant 0 : index
    %c0_45 = arith.constant 0 : index
    %88 = vector.load %arg11[%c0_44, %c0_45] : memref<1x128xf32, #tpu.memory_space<vmem>>, vector<1x128xf32>
    %89 = arith.mulf %76, %87 : vector<1x128xf32>
    %90 = arith.subf %88, %89 : vector<1x128xf32>
    %91 = vector.broadcast %87 : vector<1x128xf32> to vector<128x128xf32>
    %92 = arith.mulf %69, %91 : vector<128x128xf32>
    %93 = vector.broadcast %90 : vector<1x128xf32> to vector<128x128xf32>
    %94 = arith.addf %92, %93 : vector<128x128xf32>
    %cst_46 = arith.constant 0.000000e+00 : f32
    %95 = vector.broadcast %cst_46 : f32 to vector<128x128xf32>
    %96 = arith.maximumf %94, %95 : vector<128x128xf32>
    %97 = arith.truncf %96 : vector<128x128xf32> to vector<128x128xbf16>
    %c0_47 = arith.constant 0 : index
    %c0_48 = arith.constant 0 : index
    %98 = vector.load %arg12[%c0_47, %c0_48] : memref<128x128xbf16, #tpu.memory_space<vmem>>, vector<128x128xbf16>
    %cst_49 = arith.constant dense<0.000000e+00> : vector<128x128xf32>
    %99 = tpu.matmul %97, %98, %cst_49 {dimension_numbers = #tpu.dot_dimension_numbers<[1], [0], [0], [1], [0, 0, 1, 1], [], []>} : vector<128x128xbf16>, vector<128x128xbf16>, vector<128x128xf32> -> vector<128x128xf32>
    %100 = arith.truncf %99 : vector<128x128xf32> to vector<128x128xbf16>
    %cst_50 = arith.constant dense<0.000000e+00> : vector<128x128xf32>
    %101 = tpu.matmul %0, %100, %cst_50 {dimension_numbers = #tpu.dot_dimension_numbers<[1], [0], [0], [1], [0, 0, 1, 1], [], []>} : vector<128x128xbf16>, vector<128x128xbf16>, vector<128x128xf32> -> vector<128x128xf32>
    %cst_51 = arith.constant dense<0.000000e+00> : vector<128xf32>
    %102 = vector.multi_reduction <add>, %101, %cst_51 [0] : vector<128x128xf32> to vector<128xf32>
    %103 = vector.shape_cast %102 : vector<128xf32> to vector<1x128xf32>
    %104 = arith.mulf %101, %101 : vector<128x128xf32>
    %cst_52 = arith.constant dense<0.000000e+00> : vector<128xf32>
    %105 = vector.multi_reduction <add>, %104, %cst_52 [0] : vector<128x128xf32> to vector<128xf32>
    %106 = vector.shape_cast %105 : vector<128xf32> to vector<1x128xf32>
    %cst_53 = arith.constant 6.250000e-02 : f32
    %107 = vector.broadcast %cst_53 : f32 to vector<1x128xf32>
    %108 = arith.mulf %103, %107 : vector<1x128xf32>
    %cst_54 = arith.constant 6.250000e-02 : f32
    %109 = vector.broadcast %cst_54 : f32 to vector<1x128xf32>
    %110 = arith.mulf %106, %109 : vector<1x128xf32>
    %111 = arith.mulf %108, %108 : vector<1x128xf32>
    %112 = arith.subf %110, %111 : vector<1x128xf32>
    %cst_55 = arith.constant 0.000000e+00 : f32
    %113 = vector.broadcast %cst_55 : f32 to vector<1x128xf32>
    %114 = arith.maximumf %112, %113 : vector<1x128xf32>
    %cst_56 = arith.constant 9.99999974E-6 : f32
    %115 = vector.broadcast %cst_56 : f32 to vector<1x128xf32>
    %116 = arith.addf %114, %115 : vector<1x128xf32>
    %117 = math.rsqrt %116 : vector<1x128xf32>
    %118 = vector.broadcast %108 : vector<1x128xf32> to vector<128x128xf32>
    %119 = arith.subf %101, %118 : vector<128x128xf32>
    %120 = vector.broadcast %117 : vector<1x128xf32> to vector<128x128xf32>
    %121 = arith.mulf %119, %120 : vector<128x128xf32>
    %122 = arith.truncf %121 : vector<128x128xf32> to vector<128x128xbf16>
    %c0_57 = arith.constant 0 : index
    %c0_58 = arith.constant 0 : index
    %123 = vector.load %arg13[%c0_57, %c0_58] : memref<128x128xbf16, #tpu.memory_space<vmem>>, vector<128x128xbf16>
    %cst_59 = arith.constant dense<0.000000e+00> : vector<128x128xf32>
    %124 = tpu.matmul %122, %123, %cst_59 {dimension_numbers = #tpu.dot_dimension_numbers<[1], [0], [0], [1], [0, 0, 1, 1], [], []>} : vector<128x128xbf16>, vector<128x128xbf16>, vector<128x128xf32> -> vector<128x128xf32>
    %c0_60 = arith.constant 0 : index
    %c0_61 = arith.constant 0 : index
    %125 = vector.load %arg14[%c0_60, %c0_61] : memref<1x128xf32, #tpu.memory_space<vmem>>, vector<1x128xf32>
    %126 = vector.broadcast %125 : vector<1x128xf32> to vector<128x128xf32>
    %127 = arith.addf %124, %126 : vector<128x128xf32>
    %c0_62 = arith.constant 0 : index
    %c0_63 = arith.constant 0 : index
    %128 = vector.load %arg15[%c0_62, %c0_63] : memref<128x128xf32, #tpu.memory_space<vmem>>, vector<128x128xf32>
    tpu.vector_store %arg15[%c0_62, %c0_63], %127 {strides = array<i32>} : memref<128x128xf32, #tpu.memory_space<vmem>>, vector<128x128xf32>,
    return
  }
  func.func @transform_0(%arg0: i32) -> (i32, i32) {
    %c0_i32 = arith.constant 0 : i32
    %c0_i32_0 = arith.constant 0 : i32
    %c0_i32_1 = arith.constant 0 : i32
    return %c0_i32, %c0_i32_0 : i32, i32
  }
  func.func @transform_1(%arg0: i32) -> (i32, i32) {
    %c0_i32 = arith.constant 0 : i32
    %c0_i32_0 = arith.constant 0 : i32
    %c0_i32_1 = arith.constant 0 : i32
    return %c0_i32, %c0_i32_0 : i32, i32
  }
  func.func @transform_2(%arg0: i32) -> (i32, i32) {
    %c0_i32 = arith.constant 0 : i32
    %c0_i32_0 = arith.constant 0 : i32
    %c0_i32_1 = arith.constant 0 : i32
    return %c0_i32, %c0_i32_0 : i32, i32
  }
  func.func @transform_3(%arg0: i32) -> (i32, i32) {
    %c0_i32 = arith.constant 0 : i32
    %c0_i32_0 = arith.constant 0 : i32
    %c0_i32_1 = arith.constant 0 : i32
    return %c0_i32, %c0_i32_0 : i32, i32
  }
  func.func @transform_4(%arg0: i32) -> (i32, i32) {
    %c0_i32 = arith.constant 0 : i32
    %c0_i32_0 = arith.constant 0 : i32
    %c0_i32_1 = arith.constant 0 : i32
    return %c0_i32, %c0_i32_0 : i32, i32
  }
  func.func @transform_5(%arg0: i32) -> (i32, i32) {
    %c0_i32 = arith.constant 0 : i32
    %c0_i32_0 = arith.constant 0 : i32
    %c0_i32_1 = arith.constant 0 : i32
    return %c0_i32, %c0_i32_0 : i32, i32
  }
  func.func @transform_6(%arg0: i32) -> (i32, i32) {
    %c0_i32 = arith.constant 0 : i32
    %c0_i32_0 = arith.constant 0 : i32
    %c0_i32_1 = arith.constant 0 : i32
    return %c0_i32, %c0_i32_0 : i32, i32
  }
  func.func @transform_7(%arg0: i32) -> (i32, i32) {
    %c0_i32 = arith.constant 0 : i32
    %c0_i32_0 = arith.constant 0 : i32
    %c0_i32_1 = arith.constant 0 : i32
    return %c0_i32, %c0_i32_0 : i32, i32
  }
  func.func @transform_8(%arg0: i32) -> (i32, i32) {
    %c0_i32 = arith.constant 0 : i32
    %c0_i32_0 = arith.constant 0 : i32
    %c0_i32_1 = arith.constant 0 : i32
    return %c0_i32, %c0_i32_0 : i32, i32
  }
  func.func @transform_9(%arg0: i32) -> (i32, i32) {
    %c0_i32 = arith.constant 0 : i32
    %c0_i32_0 = arith.constant 0 : i32
    %c0_i32_1 = arith.constant 0 : i32
    return %c0_i32, %c0_i32_0 : i32, i32
  }
  func.func @transform_10(%arg0: i32) -> (i32, i32) {
    %c0_i32 = arith.constant 0 : i32
    %c0_i32_0 = arith.constant 0 : i32
    %c0_i32_1 = arith.constant 0 : i32
    return %c0_i32, %c0_i32_0 : i32, i32
  }
  func.func @transform_11(%arg0: i32) -> (i32, i32) {
    %c0_i32 = arith.constant 0 : i32
    %c0_i32_0 = arith.constant 0 : i32
    %c0_i32_1 = arith.constant 0 : i32
    return %c0_i32, %c0_i32_0 : i32, i32
  }
  func.func @transform_12(%arg0: i32) -> (i32, i32) {
    %c0_i32 = arith.constant 0 : i32
    %c0_i32_0 = arith.constant 0 : i32
    %c0_i32_1 = arith.constant 0 : i32
    return %c0_i32, %c0_i32_0 : i32, i32
  }
  func.func @transform_13(%arg0: i32) -> (i32, i32) {
    %c0_i32 = arith.constant 0 : i32
    %c0_i32_0 = arith.constant 0 : i32
    %c0_i32_1 = arith.constant 0 : i32
    return %c0_i32, %c0_i32_0 : i32, i32
  }
  func.func @transform_14(%arg0: i32) -> (i32, i32) {
    %c0_i32 = arith.constant 0 : i32
    %c0_i32_0 = arith.constant 0 : i32
    %c0_i32_1 = arith.constant 0 : i32
    return %c0_i32, %c0_i32_0 : i32, i32
  }
}

</mosaic_0001>

<llo_original>
// kernel: tpu_custom_call.1
$region0: #{tpu_custom_call.1}
  #allocation0 [shape = 'u32[]', space=smem, size = 0x4, offset = 0x4, fixed_abs, tag = 'smem constant byte address 0x4 - core index']
  #allocation1 [shape = 'u32[144,128]{1,0:T(1,128)}', space=vmem, size = 0x12000, scoped, tag = 'internal scratch']
  %s0 = inlined_call_operand.hbm [shape: bf16[128,128], index: 0, kind: input, shape index: {}]
  %s1 = inlined_call_operand.hbm [shape: bf16[128,128], index: 1, kind: input, shape index: {}]
  %s2 = inlined_call_operand.hbm [shape: bf16[128,128], index: 2, kind: input, shape index: {}]
  %s3 = inlined_call_operand.vmem [shape: f32[1,128], index: 3, kind: input, shape index: {}]
  %s4 = inlined_call_operand.vmem [shape: f32[1,128], index: 4, kind: input, shape index: {}]
  %s5 = inlined_call_operand.hbm [shape: bf16[128,128], index: 5, kind: input, shape index: {}]
  %s6 = inlined_call_operand.vmem [shape: f32[1,128], index: 6, kind: input, shape index: {}]
  %s7 = inlined_call_operand.vmem [shape: f32[1,128], index: 7, kind: input, shape index: {}]
  %s8 = inlined_call_operand.hbm [shape: bf16[128,128], index: 8, kind: input, shape index: {}]
  %s9 = inlined_call_operand.vmem [shape: f32[1,128], index: 9, kind: input, shape index: {}]
  %s10 = inlined_call_operand.vmem [shape: f32[1,128], index: 10, kind: input, shape index: {}]
  %s11 = inlined_call_operand.hbm [shape: bf16[128,128], index: 11, kind: input, shape index: {}]
  %s12 = inlined_call_operand.hbm [shape: bf16[128,128], index: 12, kind: input, shape index: {}]
  %s13 = inlined_call_operand.vmem [shape: f32[1,128], index: 13, kind: input, shape index: {}]
  %s14 = inlined_call_operand.hbm [shape: f32[128,128], index: 14, kind: output, shape index: {}]
  %s15 = sld [smem:[#allocation0]]
  $region94: #{tpu_custom_call.1} parent=0
    _
  %s17 = ssub.s32 1, %s15
  %s18 = scalar_select 0, %s17, %s15
  $region1: #{tpu_custom_call.1} parent=0
    #allocation2 [shape = 'u8[32768]{0}', space=vmem, size = 0x8000, scoped, tag = 'input window, operand 0, single buffered']
    #allocation3 [shape = 's32[1]{0}', space=sflag, size = 0x4, scoped, tag = 'scoped memory for tpu_custom_call.1']
    #allocation4 [shape = 's32[1]{0}', space=sflag, size = 0x4, scoped, tag = 'scoped memory for tpu_custom_call.1']
    #allocation5 [shape = 'u8[32768]{0}', space=vmem, size = 0x8000, scoped, tag = 'input window, operand 1, single buffered']
    #allocation6 [shape = 's32[1]{0}', space=sflag, size = 0x4, scoped, tag = 'scoped memory for tpu_custom_call.1']
    #allocation7 [shape = 'u8[32768]{0}', space=vmem, size = 0x8000, scoped, tag = 'input window, operand 2, single buffered']
    #allocation8 [shape = 'u8[32768]{0}', space=vmem, size = 0x8000, scoped, tag = 'input window, operand 5, single buffered']
    #allocation9 [shape = 's32[1]{0}', space=sflag, size = 0x4, scoped, tag = 'scoped memory for tpu_custom_call.1']
    #allocation10 [shape = 'u8[32768]{0}', space=vmem, size = 0x8000, scoped, tag = 'input window, operand 8, single buffered']
    #allocation11 [shape = 'u8[32768]{0}', space=vmem, size = 0x8000, scoped, tag = 'input window, operand 11, single buffered']
    #allocation12 [shape = 's32[1]{0}', space=sflag, size = 0x4, scoped, tag = 'scoped memory for tpu_custom_call.1']
    #allocation13 [shape = 'u8[32768]{0}', space=vmem, size = 0x8000, scoped, tag = 'input window, operand 12, single buffered']
    #allocation14 [shape = 'u8[65536]{0}', space=vmem, size = 0x10000, scoped, tag = 'output window, operand 0, single buffered']
    %19 = vsyncpa [#allocation3], 0
    %20 = vsyncpa [#allocation6], 0
    %21 = vsyncpa [#allocation9], 0
    %22 = vsyncpa [#allocation12], 0
    %23 = vsyncpa [#allocation4], 0
    // Predicated region
    $region2: #{tpu_custom_call.1} parent=1 // pred_check
      _
    $region3: #{tpu_custom_call.1} parent=1 // pred_check_branch
      %25 = sbr.rel (0) target = $region5
    $region4: #{tpu_custom_call.1} parent=1 // pred_region
      %s27 = ssub.s32 1024, 1024
      %28 = vsyncadd [#allocation3], %s27
      %s29 = sshll.u32 [#allocation2], 4
      %s30 = int_to_ptr.vmem [resolvable:$true] %s29
      %35 = dma.hbm_to_vmem [thread:$0]  %s0, 1024, %s30, [#allocation3], 64, 64, 4
    $region5: #{tpu_custom_call.1} parent=1 // pred_fallthru
      _
    // Predicated region
    $region6: #{tpu_custom_call.1} parent=1 // pred_check
      _
    $region7: #{tpu_custom_call.1} parent=1 // pred_check_branch
      %37 = sbr.rel (0) target = $region9
    $region8: #{tpu_custom_call.1} parent=1 // pred_region
      %s39 = ssub.s32 1024, 1024
      %40 = vsyncadd [#allocation6], %s39
      %s41 = sshll.u32 [#allocation5], 4
      %s42 = int_to_ptr.vmem [resolvable:$true] %s41
      %47 = dma.hbm_to_vmem [thread:$0]  %s1, 1024, %s42, [#allocation6], 64, 64, 4
    $region9: #{tpu_custom_call.1} parent=1 // pred_fallthru
      _
    // Predicated region
    $region10: #{tpu_custom_call.1} parent=1 // pred_check
      _
    $region11: #{tpu_custom_call.1} parent=1 // pred_check_branch
      %49 = sbr.rel (0) target = $region13
    $region12: #{tpu_custom_call.1} parent=1 // pred_region
      %s51 = ssub.s32 1024, 1024
      %52 = vsyncadd [#allocation6], %s51
      %s53 = sshll.u32 [#allocation7], 4
      %s54 = int_to_ptr.vmem [resolvable:$true] %s53
      %59 = dma.hbm_to_vmem [thread:$0]  %s2, 1024, %s54, [#allocation6], 64, 64, 4
    $region13: #{tpu_custom_call.1} parent=1 // pred_fallthru
      _
    // Predicated region
    $region14: #{tpu_custom_call.1} parent=1 // pred_check
      _
    $region15: #{tpu_custom_call.1} parent=1 // pred_check_branch
      %61 = sbr.rel (0) target = $region17
    $region16: #{tpu_custom_call.1} parent=1 // pred_region
      _
    $region17: #{tpu_custom_call.1} parent=1 // pred_fallthru
      _
    // Predicated region
    $region18: #{tpu_custom_call.1} parent=1 // pred_check
      _
    $region19: #{tpu_custom_call.1} parent=1 // pred_check_branch
      %63 = sbr.rel (0) target = $region21
    $region20: #{tpu_custom_call.1} parent=1 // pred_region
      _
    $region21: #{tpu_custom_call.1} parent=1 // pred_fallthru
      _
    // Predicated region
    $region22: #{tpu_custom_call.1} parent=1 // pred_check
      _
    $region23: #{tpu_custom_call.1} parent=1 // pred_check_branch
      %65 = sbr.rel (0) target = $region25
    $region24: #{tpu_custom_call.1} parent=1 // pred_region
      %s67 = ssub.s32 1024, 1024
      %68 = vsyncadd [#allocation9], %s67
      %s69 = sshll.u32 [#allocation8], 4
      %s70 = int_to_ptr.vmem [resolvable:$true] %s69
      %75 = dma.hbm_to_vmem [thread:$0]  %s5, 1024, %s70, [#allocation9], 64, 64, 4
    $region25: #{tpu_custom_call.1} parent=1 // pred_fallthru
      _
    // Predicated region
    $region26: #{tpu_custom_call.1} parent=1 // pred_check
      _
    $region27: #{tpu_custom_call.1} parent=1 // pred_check_branch
      %77 = sbr.rel (0) target = $region29
    $region28: #{tpu_custom_call.1} parent=1 // pred_region
      _
    $region29: #{tpu_custom_call.1} parent=1 // pred_fallthru
      _
    // Predicated region
    $region30: #{tpu_custom_call.1} parent=1 // pred_check
      _
    $region31: #{tpu_custom_call.1} parent=1 // pred_check_branch
      %79 = sbr.rel (0) target = $region33
    $region32: #{tpu_custom_call.1} parent=1 // pred_region
      _
    $region33: #{tpu_custom_call.1} parent=1 // pred_fallthru
      _
    // Predicated region
    $region34: #{tpu_custom_call.1} parent=1 // pred_check
      _
    $region35: #{tpu_custom_call.1} parent=1 // pred_check_branch
      %81 = sbr.rel (0) target = $region37
    $region36: #{tpu_custom_call.1} parent=1 // pred_region
      %s83 = ssub.s32 1024, 1024
      %84 = vsyncadd [#allocation9], %s83
      %s85 = sshll.u32 [#allocation10], 4
      %s86 = int_to_ptr.vmem [resolvable:$true] %s85
      %91 = dma.hbm_to_vmem [thread:$0]  %s8, 1024, %s86, [#allocation9], 64, 64, 4
    $region37: #{tpu_custom_call.1} parent=1 // pred_fallthru
      _
    // Predicated region
    $region38: #{tpu_custom_call.1} parent=1 // pred_check
      _
    $region39: #{tpu_custom_call.1} parent=1 // pred_check_branch
      %93 = sbr.rel (0) target = $region41
    $region40: #{tpu_custom_call.1} parent=1 // pred_region
      _
    $region41: #{tpu_custom_call.1} parent=1 // pred_fallthru
      _
    // Predicated region
    $region42: #{tpu_custom_call.1} parent=1 // pred_check
      _
    $region43: #{tpu_custom_call.1} parent=1 // pred_check_branch
      %95 = sbr.rel (0) target = $region45
    $region44: #{tpu_custom_call.1} parent=1 // pred_region
      _
    $region45: #{tpu_custom_call.1} parent=1 // pred_fallthru
      _
    // Predicated region
    $region46: #{tpu_custom_call.1} parent=1 // pred_check
      _
    $region47: #{tpu_custom_call.1} parent=1 // pred_check_branch
      %97 = sbr.rel (0) target = $region49
    $region48: #{tpu_custom_call.1} parent=1 // pred_region
      %s99 = ssub.s32 1024, 1024
      %100 = vsyncadd [#allocation12], %s99
      %s101 = sshll.u32 [#allocation11], 4
      %s102 = int_to_ptr.vmem [resolvable:$true] %s101
      %107 = dma.hbm_to_vmem [thread:$0]  %s11, 1024, %s102, [#allocation12], 64, 64, 4
    $region49: #{tpu_custom_call.1} parent=1 // pred_fallthru
      _
    // Predicated region
    $region50: #{tpu_custom_call.1} parent=1 // pred_check
      _
    $region51: #{tpu_custom_call.1} parent=1 // pred_check_branch
      %109 = sbr.rel (0) target = $region53
    $region52: #{tpu_custom_call.1} parent=1 // pred_region
      %s111 = ssub.s32 1024, 1024
      %112 = vsyncadd [#allocation12], %s111
      %s113 = sshll.u32 [#allocation13], 4
      %s114 = int_to_ptr.vmem [resolvable:$true] %s113
      %119 = dma.hbm_to_vmem [thread:$0]  %s12, 1024, %s114, [#allocation12], 64, 64, 4
    $region53: #{tpu_custom_call.1} parent=1 // pred_fallthru
      _
    // Predicated region
    $region54: #{tpu_custom_call.1} parent=1 // pred_check
      _
    $region55: #{tpu_custom_call.1} parent=1 // pred_check_branch
      %121 = sbr.rel (0) target = $region57
    $region56: #{tpu_custom_call.1} parent=1 // pred_region
      _
    $region57: #{tpu_custom_call.1} parent=1 // pred_fallthru
      _
    // Predicated region
    $region58: #{tpu_custom_call.1} parent=1 // pred_check
      _
    $region59: #{tpu_custom_call.1} parent=1 // pred_check_branch
      %123 = sbr.rel (0) target = $region61
    $region60: #{tpu_custom_call.1} parent=1 // pred_region
      %124 = dma.done [#allocation3], 1024
    $region61: #{tpu_custom_call.1} parent=1 // pred_fallthru
      _
    // Predicated region
    $region62: #{tpu_custom_call.1} parent=1 // pred_check
      _
    $region63: #{tpu_custom_call.1} parent=1 // pred_check_branch
      %126 = sbr.rel (0) target = $region65
    $region64: #{tpu_custom_call.1} parent=1 // pred_region
      %127 = dma.done [#allocation6], 1024
    $region65: #{tpu_custom_call.1} parent=1 // pred_fallthru
      _
    // Predicated region
    $region66: #{tpu_custom_call.1} parent=1 // pred_check
      _
    $region67: #{tpu_custom_call.1} parent=1 // pred_check_branch
      %129 = sbr.rel (0) target = $region69
    $region68: #{tpu_custom_call.1} parent=1 // pred_region
      %130 = dma.done [#allocation6], 1024
    $region69: #{tpu_custom_call.1} parent=1 // pred_fallthru
      _
    // Predicated region
    $region70: #{tpu_custom_call.1} parent=1 // pred_check
      _
    $region71: #{tpu_custom_call.1} parent=1 // pred_check_branch
      %132 = sbr.rel (0) target = $region73
    $region72: #{tpu_custom_call.1} parent=1 // pred_region
      %133 = dma.done [#allocation9], 1024
    $region73: #{tpu_custom_call.1} parent=1 // pred_fallthru
      _
    // Predicated region
    $region74: #{tpu_custom_call.1} parent=1 // pred_check
      _
    $region75: #{tpu_custom_call.1} parent=1 // pred_check_branch
      %135 = sbr.rel (0) target = $region77
    $region76: #{tpu_custom_call.1} parent=1 // pred_region
      %136 = dma.done [#allocation9], 1024
    $region77: #{tpu_custom_call.1} parent=1 // pred_fallthru
      _
    // Predicated region
    $region78: #{tpu_custom_call.1} parent=1 // pred_check
      _
    $region79: #{tpu_custom_call.1} parent=1 // pred_check_branch
      %138 = sbr.rel (0) target = $region81
    $region80: #{tpu_custom_call.1} parent=1 // pred_region
      %139 = dma.done [#allocation12], 1024
    $region81: #{tpu_custom_call.1} parent=1 // pred_fallthru
      _
    // Predicated region
    $region82: #{tpu_custom_call.1} parent=1 // pred_check
      _
    $region83: #{tpu_custom_call.1} parent=1 // pred_check_branch
      %141 = sbr.rel (0) target = $region85
    $region84: #{tpu_custom_call.1} parent=1 // pred_region
      %142 = dma.done [#allocation12], 1024
    $region85: #{tpu_custom_call.1} parent=1 // pred_fallthru
      _
    %v144 = vld [vmem:[#allocation2] sm:$0xf]
    %v145 = vld [vmem:[#allocation2 + $0x4] sm:$0xf]
    %v146 = vld [vmem:[#allocation2 + $0x8] sm:$0xf]
    %v147 = vld [vmem:[#allocation2 + $0xc] sm:$0xf]
    %v148 = vld [vmem:[#allocation2 + $0x10] sm:$0xf]
    %v149 = vld [vmem:[#allocation2 + $0x14] sm:$0xf]
    %v150 = vld [vmem:[#allocation2 + $0x18] sm:$0xf]
    %v151 = vld [vmem:[#allocation2 + $0x1c] sm:$0xf]
    %v152 = vld [vmem:[#allocation2 + $0x20] sm:$0xf]
    %v153 = vld [vmem:[#allocation2 + $0x24] sm:$0xf]
    %v154 = vld [vmem:[#allocation2 + $0x28] sm:$0xf]
    %v155 = vld [vmem:[#allocation2 + $0x2c] sm:$0xf]
    %v156 = vld [vmem:[#allocation2 + $0x30] sm:$0xf]
    %v157 = vld [vmem:[#allocation2 + $0x34] sm:$0xf]
    %v158 = vld [vmem:[#allocation2 + $0x38] sm:$0xf]
    %v159 = vld [vmem:[#allocation2 + $0x3c] sm:$0xf]
    %v160 = vld [vmem:[#allocation5] sm:$0xf]
    %v161 = vld [vmem:[#allocation5 + $0x4] sm:$0xf]
    %v162 = vld [vmem:[#allocation5 + $0x8] sm:$0xf]
    %v163 = vld [vmem:[#allocation5 + $0xc] sm:$0xf]
    %v164 = vld [vmem:[#allocation5 + $0x10] sm:$0xf]
    %v165 = vld [vmem:[#allocation5 + $0x14] sm:$0xf]
    %v166 = vld [vmem:[#allocation5 + $0x18] sm:$0xf]
    %v167 = vld [vmem:[#allocation5 + $0x1c] sm:$0xf]
    %v168 = vld [vmem:[#allocation5 + $0x20] sm:$0xf]
    %v169 = vld [vmem:[#allocation5 + $0x24] sm:$0xf]
    %v170 = vld [vmem:[#allocation5 + $0x28] sm:$0xf]
    %v171 = vld [vmem:[#allocation5 + $0x2c] sm:$0xf]
    %v172 = vld [vmem:[#allocation5 + $0x30] sm:$0xf]
    %v173 = vld [vmem:[#allocation5 + $0x34] sm:$0xf]
    %v174 = vld [vmem:[#allocation5 + $0x38] sm:$0xf]
    %v175 = vld [vmem:[#allocation5 + $0x3c] sm:$0xf]
    %v176 = vld [vmem:[#allocation7] sm:$0xf]
    %v177 = vld [vmem:[#allocation7 + $0x4] sm:$0xf]
    %v178 = vld [vmem:[#allocation7 + $0x8] sm:$0xf]
    %v179 = vld [vmem:[#allocation7 + $0xc] sm:$0xf]
    %v180 = vld [vmem:[#allocation7 + $0x10] sm:$0xf]
    %v181 = vld [vmem:[#allocation7 + $0x14] sm:$0xf]
    %v182 = vld [vmem:[#allocation7 + $0x18] sm:$0xf]
    %v183 = vld [vmem:[#allocation7 + $0x1c] sm:$0xf]
    %v184 = vld [vmem:[#allocation7 + $0x20] sm:$0xf]
    %v185 = vld [vmem:[#allocation7 + $0x24] sm:$0xf]
    %v186 = vld [vmem:[#allocation7 + $0x28] sm:$0xf]
    %v187 = vld [vmem:[#allocation7 + $0x2c] sm:$0xf]
    %v188 = vld [vmem:[#allocation7 + $0x30] sm:$0xf]
    %v189 = vld [vmem:[#allocation7 + $0x34] sm:$0xf]
    %v190 = vld [vmem:[#allocation7 + $0x38] sm:$0xf]
    %v191 = vld [vmem:[#allocation7 + $0x3c] sm:$0xf]
    %v208 = vunpack.c.l.b16 %v160
    %v209 = vunpack.c.l.b16 %v161
    %v210 = vunpack.c.l.b16 %v162
    %v211 = vunpack.c.l.b16 %v163
    %v212 = vunpack.c.l.b16 %v164
    %v213 = vunpack.c.l.b16 %v165
    %v214 = vunpack.c.l.b16 %v166
    %v215 = vunpack.c.l.b16 %v167
    %v216 = vunpack.c.l.b16 %v168
    %v217 = vunpack.c.l.b16 %v169
    %v218 = vunpack.c.l.b16 %v170
    %v219 = vunpack.c.l.b16 %v171
    %v220 = vunpack.c.l.b16 %v172
    %v221 = vunpack.c.l.b16 %v173
    %v222 = vunpack.c.l.b16 %v174
    %v223 = vunpack.c.l.b16 %v175
    %v224 = vpack.c.b16 %v209, %v208
    %v225 = vpack.c.b16 %v211, %v210
    %v226 = vpack.c.b16 %v213, %v212
    %v227 = vpack.c.b16 %v215, %v214
    %v228 = vpack.c.b16 %v217, %v216
    %v229 = vpack.c.b16 %v219, %v218
    %v230 = vpack.c.b16 %v221, %v220
    %v231 = vpack.c.b16 %v223, %v222
    %v256 = vunpack.c.l.b16 %v176
    %v257 = vunpack.c.l.b16 %v177
    %v258 = vunpack.c.l.b16 %v178
    %v259 = vunpack.c.l.b16 %v179
    %v260 = vunpack.c.l.b16 %v180
    %v261 = vunpack.c.l.b16 %v181
    %v262 = vunpack.c.l.b16 %v182
    %v263 = vunpack.c.l.b16 %v183
    %v264 = vunpack.c.l.b16 %v184
    %v265 = vunpack.c.l.b16 %v185
    %v266 = vunpack.c.l.b16 %v186
    %v267 = vunpack.c.l.b16 %v187
    %v268 = vunpack.c.l.b16 %v188
    %v269 = vunpack.c.l.b16 %v189
    %v270 = vunpack.c.l.b16 %v190
    %v271 = vunpack.c.l.b16 %v191
    %v272 = vpack.c.b16 %v257, %v256
    %v273 = vpack.c.b16 %v259, %v258
    %v274 = vpack.c.b16 %v261, %v260
    %v275 = vpack.c.b16 %v263, %v262
    %v276 = vpack.c.b16 %v265, %v264
    %v277 = vpack.c.b16 %v267, %v266
    %v278 = vpack.c.b16 %v269, %v268
    %v279 = vpack.c.b16 %v271, %v270
    %288 = vmatprep.subr.bf16.mxu0 0
    %289 = vmatpush1.bf16.msra.mxu0 %v279
    %290 = vmatprep.subr.bf16.mxu0 0
    %291 = vmatpush1.bf16.msra.mxu0 %v278
    %292 = vmatprep.subr.bf16.mxu0 0
    %293 = vmatpush1.bf16.msra.mxu0 %v277
    %294 = vmatprep.subr.bf16.mxu0 0
    %295 = vmatpush1.bf16.msra.mxu0 %v276
    %296 = vmatprep.subr.bf16.mxu0 0
    %297 = vmatpush1.bf16.msra.mxu0 %v275
    %298 = vmatprep.subr.bf16.mxu0 0
    %299 = vmatpush1.bf16.msra.mxu0 %v274
    %300 = vmatprep.subr.bf16.mxu0 0
    %301 = vmatpush1.bf16.msra.mxu0 %v273
    %302 = vmatprep.subr.bf16.mxu0 0
    %303 = vmatpush1.bf16.msra.mxu0 %v272
    %304 = vmatprep.subr.bf16.mxu0 0
    %305 = vmatpush2.bf16.msra.mxu0 0
    %306 = vmatprep.subr.bf16.mxu0 0
    %307 = vmatpush2.bf16.msra.mxu0 0
    %308 = vmatprep.subr.bf16.mxu0 0
    %309 = vmatpush2.bf16.msra.mxu0 0
    %310 = vmatprep.subr.bf16.mxu0 0
    %311 = vmatpush2.bf16.msra.mxu0 0
    %312 = vmatprep.subr.bf16.mxu0 0
    %313 = vmatpush2.bf16.msra.mxu0 0
    %314 = vmatprep.subr.bf16.mxu0 0
    %315 = vmatpush2.bf16.msra.mxu0 0
    %316 = vmatprep.subr.bf16.mxu0 0
    %317 = vmatpush2.bf16.msra.mxu0 0
    %318 = vmatprep.subr.bf16.mxu0 0
    %319 = vmatpush2.bf16.msra.mxu0 0
    %320 = vmatprep.mubr.bf16.mxu0 0
    %321 = vmatmul.mubr.bf16.gmra.mxu0 %v224
    %v322 = vpop.f32.mrf.mxu0
    %v323 = vadd.f32 0.0, %v322
    %v324 = vpop.f32.mrf.mxu0
    %v325 = vpop.f32.mrf.mxu0
    %v326 = vadd.f32 0.0, %v325
    %v327 = vpop.f32.mrf.mxu0
    %328 = vmatprep.mubr.bf16.mxu0 0
    %329 = vmatmul.mubr.bf16.gmra.mxu0 %v225
    %v330 = vpop.f32.mrf.mxu0
    %v331 = vadd.f32 0.0, %v330
    %v332 = vpop.f32.mrf.mxu0
    %v333 = vpop.f32.mrf.mxu0
    %v334 = vadd.f32 0.0, %v333
    %v335 = vpop.f32.mrf.mxu0
    %336 = vmatprep.mubr.bf16.mxu0 0
    %337 = vmatmul.mubr.bf16.gmra.mxu0 %v226
    %v338 = vpop.f32.mrf.mxu0
    %v339 = vadd.f32 0.0, %v338
    %v340 = vpop.f32.mrf.mxu0
    %v341 = vpop.f32.mrf.mxu0
    %v342 = vadd.f32 0.0, %v341
    %v343 = vpop.f32.mrf.mxu0
    %344 = vmatprep.mubr.bf16.mxu0 0
    %345 = vmatmul.mubr.bf16.gmra.mxu0 %v227
    %v346 = vpop.f32.mrf.mxu0
    %v347 = vadd.f32 0.0, %v346
    %v348 = vpop.f32.mrf.mxu0
    %v349 = vpop.f32.mrf.mxu0
    %v350 = vadd.f32 0.0, %v349
    %v351 = vpop.f32.mrf.mxu0
    %352 = vmatprep.mubr.bf16.mxu0 0
    %353 = vmatmul.mubr.bf16.gmra.mxu0 %v228
    %v354 = vpop.f32.mrf.mxu0
    %v355 = vadd.f32 0.0, %v354
    %v356 = vpop.f32.mrf.mxu0
    %v357 = vpop.f32.mrf.mxu0
    %v358 = vadd.f32 0.0, %v357
    %v359 = vpop.f32.mrf.mxu0
    %360 = vmatprep.mubr.bf16.mxu0 0
    %361 = vmatmul.mubr.bf16.gmra.mxu0 %v229
    %v362 = vpop.f32.mrf.mxu0
    %v363 = vadd.f32 0.0, %v362
    %v364 = vpop.f32.mrf.mxu0
    %v365 = vpop.f32.mrf.mxu0
    %v366 = vadd.f32 0.0, %v365
    %v367 = vpop.f32.mrf.mxu0
    %368 = vmatprep.mubr.bf16.mxu0 0
    %369 = vmatmul.mubr.bf16.gmra.mxu0 %v230
    %v370 = vpop.f32.mrf.mxu0
    %v371 = vadd.f32 0.0, %v370
    %v372 = vpop.f32.mrf.mxu0
    %v373 = vpop.f32.mrf.mxu0
    %v374 = vadd.f32 0.0, %v373
    %v375 = vpop.f32.mrf.mxu0
    %376 = vmatprep.mubr.bf16.mxu0 0
    %377 = vmatmul.mubr.bf16.gmra.mxu0 %v231
    %v378 = vpop.f32.mrf.mxu0
    %v379 = vadd.f32 0.0, %v378
    %v380 = vpop.f32.mrf.mxu0
    %v381 = vpop.f32.mrf.mxu0
    %v382 = vadd.f32 0.0, %v381
    %v383 = vpop.f32.mrf.mxu0
    %384 = vdwg.mxu0
    %v385 = vpack.c.bf16 %v326, %v323
    %v386 = vpack.c.bf16 %v334, %v331
    %v387 = vpack.c.bf16 %v342, %v339
    %v388 = vpack.c.bf16 %v350, %v347
    %v389 = vpack.c.bf16 %v358, %v355
    %v390 = vpack.c.bf16 %v366, %v363
    %v391 = vpack.c.bf16 %v374, %v371
    %v392 = vpack.c.bf16 %v382, %v379
    %v409 = vunpack.c.l.b16 %v144
    %v410 = vunpack.c.l.b16 %v145
    %v411 = vunpack.c.l.b16 %v146
    %v412 = vunpack.c.l.b16 %v147
    %v413 = vunpack.c.l.b16 %v148
    %v414 = vunpack.c.l.b16 %v149
    %v415 = vunpack.c.l.b16 %v150
    %v416 = vunpack.c.l.b16 %v151
    %v417 = vunpack.c.l.b16 %v152
    %v418 = vunpack.c.l.b16 %v153
    %v419 = vunpack.c.l.b16 %v154
    %v420 = vunpack.c.l.b16 %v155
    %v421 = vunpack.c.l.b16 %v156
    %v422 = vunpack.c.l.b16 %v157
    %v423 = vunpack.c.l.b16 %v158
    %v424 = vunpack.c.l.b16 %v159
    %v425 = vpack.c.b16 %v410, %v409
    %v426 = vpack.c.b16 %v412, %v411
    %v427 = vpack.c.b16 %v414, %v413
    %v428 = vpack.c.b16 %v416, %v415
    %v429 = vpack.c.b16 %v418, %v417
    %v430 = vpack.c.b16 %v420, %v419
    %v431 = vpack.c.b16 %v422, %v421
    %v432 = vpack.c.b16 %v424, %v423
    %441 = vmatprep.subr.bf16.mxu0 0
    %442 = vmatpush1.bf16.msra.mxu0 %v392
    %443 = vmatprep.subr.bf16.mxu0 0
    %444 = vmatpush1.bf16.msra.mxu0 %v391
    %445 = vmatprep.subr.bf16.mxu0 0
    %446 = vmatpush1.bf16.msra.mxu0 %v390
    %447 = vmatprep.subr.bf16.mxu0 0
    %448 = vmatpush1.bf16.msra.mxu0 %v389
    %449 = vmatprep.subr.bf16.mxu0 0
    %450 = vmatpush1.bf16.msra.mxu0 %v388
    %451 = vmatprep.subr.bf16.mxu0 0
    %452 = vmatpush1.bf16.msra.mxu0 %v387
    %453 = vmatprep.subr.bf16.mxu0 0
    %454 = vmatpush1.bf16.msra.mxu0 %v386
    %455 = vmatprep.subr.bf16.mxu0 0
    %456 = vmatpush1.bf16.msra.mxu0 %v385
    %457 = vmatprep.subr.bf16.mxu0 0
    %458 = vmatpush2.bf16.msra.mxu0 0
    %459 = vmatprep.subr.bf16.mxu0 0
    %460 = vmatpush2.bf16.msra.mxu0 0
    %461 = vmatprep.subr.bf16.mxu0 0
    %462 = vmatpush2.bf16.msra.mxu0 0
    %463 = vmatprep.subr.bf16.mxu0 0
    %464 = vmatpush2.bf16.msra.mxu0 0
    %465 = vmatprep.subr.bf16.mxu0 0
    %466 = vmatpush2.bf16.msra.mxu0 0
    %467 = vmatprep.subr.bf16.mxu0 0
    %468 = vmatpush2.bf16.msra.mxu0 0
    %469 = vmatprep.subr.bf16.mxu0 0
    %470 = vmatpush2.bf16.msra.mxu0 0
    %471 = vmatprep.subr.bf16.mxu0 0
    %472 = vmatpush2.bf16.msra.mxu0 0
    %473 = vmatprep.mubr.bf16.mxu0 0
    %474 = vmatmul.mubr.bf16.gmra.mxu0 %v425
    %v475 = vpop.f32.mrf.mxu0
    %v476 = vadd.f32 0.0, %v475
    %v477 = vpop.f32.mrf.mxu0
    %v478 = vpop.f32.mrf.mxu0
    %v479 = vadd.f32 0.0, %v478
    %v480 = vpop.f32.mrf.mxu0
    %481 = vmatprep.mubr.bf16.mxu0 0
    %482 = vmatmul.mubr.bf16.gmra.mxu0 %v426
    %v483 = vpop.f32.mrf.mxu0
    %v484 = vadd.f32 0.0, %v483
    %v485 = vpop.f32.mrf.mxu0
    %v486 = vpop.f32.mrf.mxu0
    %v487 = vadd.f32 0.0, %v486
    %v488 = vpop.f32.mrf.mxu0
    %489 = vmatprep.mubr.bf16.mxu0 0
    %490 = vmatmul.mubr.bf16.gmra.mxu0 %v427
    %v491 = vpop.f32.mrf.mxu0
    %v492 = vadd.f32 0.0, %v491
    %v493 = vpop.f32.mrf.mxu0
    %v494 = vpop.f32.mrf.mxu0
    %v495 = vadd.f32 0.0, %v494
    %v496 = vpop.f32.mrf.mxu0
    %497 = vmatprep.mubr.bf16.mxu0 0
    %498 = vmatmul.mubr.bf16.gmra.mxu0 %v428
    %v499 = vpop.f32.mrf.mxu0
    %v500 = vadd.f32 0.0, %v499
    %v501 = vpop.f32.mrf.mxu0
    %v502 = vpop.f32.mrf.mxu0
    %v503 = vadd.f32 0.0, %v502
    %v504 = vpop.f32.mrf.mxu0
    %505 = vmatprep.mubr.bf16.mxu0 0
    %506 = vmatmul.mubr.bf16.gmra.mxu0 %v429
    %v507 = vpop.f32.mrf.mxu0
    %v508 = vadd.f32 0.0, %v507
    %v509 = vpop.f32.mrf.mxu0
    %v510 = vpop.f32.mrf.mxu0
    %v511 = vadd.f32 0.0, %v510
    %v512 = vpop.f32.mrf.mxu0
    %513 = vmatprep.mubr.bf16.mxu0 0
    %514 = vmatmul.mubr.bf16.gmra.mxu0 %v430
    %v515 = vpop.f32.mrf.mxu0
    %v516 = vadd.f32 0.0, %v515
    %v517 = vpop.f32.mrf.mxu0
    %v518 = vpop.f32.mrf.mxu0
    %v519 = vadd.f32 0.0, %v518
    %v520 = vpop.f32.mrf.mxu0
    %521 = vmatprep.mubr.bf16.mxu0 0
    %522 = vmatmul.mubr.bf16.gmra.mxu0 %v431
    %v523 = vpop.f32.mrf.mxu0
    %v524 = vadd.f32 0.0, %v523
    %v525 = vpop.f32.mrf.mxu0
    %v526 = vpop.f32.mrf.mxu0
    %v527 = vadd.f32 0.0, %v526
    %v528 = vpop.f32.mrf.mxu0
    %529 = vmatprep.mubr.bf16.mxu0 0
    %530 = vmatmul.mubr.bf16.gmra.mxu0 %v432
    %v531 = vpop.f32.mrf.mxu0
    %v532 = vadd.f32 0.0, %v531
    %v533 = vpop.f32.mrf.mxu0
    %v534 = vpop.f32.mrf.mxu0
    %v535 = vadd.f32 0.0, %v534
    %v536 = vpop.f32.mrf.mxu0
    %537 = vdwg.mxu0
    %v538 = vadd.f32 %v476, %v479
    %v539 = vadd.f32 %v538, %v484
    %v540 = vadd.f32 %v539, %v487
    %v541 = vadd.f32 %v540, %v492
    %v542 = vadd.f32 %v541, %v495
    %v543 = vadd.f32 %v542, %v500
    %v544 = vadd.f32 %v543, %v503
    %v545 = vadd.f32 %v544, %v508
    %v546 = vadd.f32 %v545, %v511
    %v547 = vadd.f32 %v546, %v516
    %v548 = vadd.f32 %v547, %v519
    %v549 = vadd.f32 %v548, %v524
    %v550 = vadd.f32 %v549, %v527
    %v551 = vadd.f32 %v550, %v532
    %v552 = vadd.f32 %v551, %v535
    %v553 = vrot.slane %v552, 4
    %v554 = vadd.f32 %v552, %v553
    %v555 = vrot.slane %v554, 2
    %v556 = vadd.f32 %v554, %v555
    %v557 = vrot.slane %v556, 1
    %v558 = vadd.f32 %v556, %v557
    %v559 = vmul.f32 %v476, %v476
    %v560 = vmul.f32 %v479, %v479
    %v561 = vmul.f32 %v484, %v484
    %v562 = vmul.f32 %v487, %v487
    %v563 = vmul.f32 %v492, %v492
    %v564 = vmul.f32 %v495, %v495
    %v565 = vmul.f32 %v500, %v500
    %v566 = vmul.f32 %v503, %v503
    %v567 = vmul.f32 %v508, %v508
    %v568 = vmul.f32 %v511, %v511
    %v569 = vmul.f32 %v516, %v516
    %v570 = vmul.f32 %v519, %v519
    %v571 = vmul.f32 %v524, %v524
    %v572 = vmul.f32 %v527, %v527
    %v573 = vmul.f32 %v532, %v532
    %v574 = vmul.f32 %v535, %v535
    %v575 = vadd.f32 %v559, %v560
    %v576 = vadd.f32 %v575, %v561
    %v577 = vadd.f32 %v576, %v562
    %v578 = vadd.f32 %v577, %v563
    %v579 = vadd.f32 %v578, %v564
    %v580 = vadd.f32 %v579, %v565
    %v581 = vadd.f32 %v580, %v566
    %v582 = vadd.f32 %v581, %v567
    %v583 = vadd.f32 %v582, %v568
    %v584 = vadd.f32 %v583, %v569
    %v585 = vadd.f32 %v584, %v570
    %v586 = vadd.f32 %v585, %v571
    %v587 = vadd.f32 %v586, %v572
    %v588 = vadd.f32 %v587, %v573
    %v589 = vadd.f32 %v588, %v574
    %v590 = vrot.slane %v589, 4
    %v591 = vadd.f32 %v589, %v590
    %v592 = vrot.slane %v591, 2
    %v593 = vadd.f32 %v591, %v592
    %v594 = vrot.slane %v593, 1
    %v595 = vadd.f32 %v593, %v594
    %v596 = vmul.f32 %v558, 0.0625
    %v597 = vmul.f32 %v595, 0.0625
    %v598 = vmul.f32 %v596, %v596
    %v599 = vsub.f32 %v597, %v598
    %v600 = vmax.f32 %v599, 0.0
    %v601 = vadd.f32 %v600, 1e-05
    %v602 = vrsqrt.pop %v601
    %v603 = vld [vmem:[%s3] sm:$0x1]
    %v604 = vmul.f32 %v602, %v603
    %v605 = vld [vmem:[%s4] sm:$0x1]
    %v606 = vmul.f32 %v596, %v604
    %v607 = vsub.f32 %v605, %v606
    %v608 = vlaneseq
    %v609 = vshrl.u32 %v608, 7
    %v610 = vsub.s32 0, %v609
    %v611 = vrot.slane %v604, %v610
    %v612 = vmul.f32 %v476, %v611
    %v613 = vmul.f32 %v479, %v611
    %v614 = vmul.f32 %v484, %v611
    %v615 = vmul.f32 %v487, %v611
    %v616 = vmul.f32 %v492, %v611
    %v617 = vmul.f32 %v495, %v611
    %v618 = vmul.f32 %v500, %v611
    %v619 = vmul.f32 %v503, %v611
    %v620 = vmul.f32 %v508, %v611
    %v621 = vmul.f32 %v511, %v611
    %v622 = vmul.f32 %v516, %v611
    %v623 = vmul.f32 %v519, %v611
    %v624 = vmul.f32 %v524, %v611
    %v625 = vmul.f32 %v527, %v611
    %v626 = vmul.f32 %v532, %v611
    %v627 = vmul.f32 %v535, %v611
    %v629 = vlaneseq
    %v630 = vshrl.u32 %v629, 7
    %v631 = vsub.s32 0, %v630
    %v632 = vrot.slane %v607, %v631
    %v634 = vadd.f32 %v612, %v632
    %v635 = vadd.f32 %v613, %v632
    %v636 = vadd.f32 %v614, %v632
    %v637 = vadd.f32 %v615, %v632
    %v638 = vadd.f32 %v616, %v632
    %v639 = vadd.f32 %v617, %v632
    %v640 = vadd.f32 %v618, %v632
    %v641 = vadd.f32 %v619, %v632
    %v642 = vadd.f32 %v620, %v632
    %v643 = vadd.f32 %v621, %v632
    %v644 = vadd.f32 %v622, %v632
    %v645 = vadd.f32 %v623, %v632
    %v646 = vadd.f32 %v624, %v632
    %v647 = vadd.f32 %v625, %v632
    %v648 = vadd.f32 %v626, %v632
    %v649 = vadd.f32 %v627, %v632
    %v650 = vmax.f32 %v634, 0.0
    %v651 = vmax.f32 %v635, 0.0
    %v652 = vmax.f32 %v636, 0.0
    %v653 = vmax.f32 %v637, 0.0
    %v654 = vmax.f32 %v638, 0.0
    %v655 = vmax.f32 %v639, 0.0
    %v656 = vmax.f32 %v640, 0.0
    %v657 = vmax.f32 %v641, 0.0
    %v658 = vmax.f32 %v642, 0.0
    %v659 = vmax.f32 %v643, 0.0
    %v660 = vmax.f32 %v644, 0.0
    %v661 = vmax.f32 %v645, 0.0
    %v662 = vmax.f32 %v646, 0.0
    %v663 = vmax.f32 %v647, 0.0
    %v664 = vmax.f32 %v648, 0.0
    %v665 = vmax.f32 %v649, 0.0
    %v666 = vpack.c.bf16 %v651, %v650
    %v667 = vpack.c.bf16 %v653, %v652
    %v668 = vpack.c.bf16 %v655, %v654
    %v669 = vpack.c.bf16 %v657, %v656
    %v670 = vpack.c.bf16 %v659, %v658
    %v671 = vpack.c.bf16 %v661, %v660
    %v672 = vpack.c.bf16 %v663, %v662
    %v673 = vpack.c.bf16 %v665, %v664
    %v674 = vld [vmem:[#allocation8] sm:$0xf]
    %v675 = vld [vmem:[#allocation8 + $0x4] sm:$0xf]
    %v676 = vld [vmem:[#allocation8 + $0x8] sm:$0xf]
    %v677 = vld [vmem:[#allocation8 + $0xc] sm:$0xf]
    %v678 = vld [vmem:[#allocation8 + $0x10] sm:$0xf]
    %v679 = vld [vmem:[#allocation8 + $0x14] sm:$0xf]
    %v680 = vld [vmem:[#allocation8 + $0x18] sm:$0xf]
    %v681 = vld [vmem:[#allocation8 + $0x1c] sm:$0xf]
    %v682 = vld [vmem:[#allocation8 + $0x20] sm:$0xf]
    %v683 = vld [vmem:[#allocation8 + $0x24] sm:$0xf]
    %v684 = vld [vmem:[#allocation8 + $0x28] sm:$0xf]
    %v685 = vld [vmem:[#allocation8 + $0x2c] sm:$0xf]
    %v686 = vld [vmem:[#allocation8 + $0x30] sm:$0xf]
    %v687 = vld [vmem:[#allocation8 + $0x34] sm:$0xf]
    %v688 = vld [vmem:[#allocation8 + $0x38] sm:$0xf]
    %v689 = vld [vmem:[#allocation8 + $0x3c] sm:$0xf]
    %v706 = vunpack.c.l.b16 %v674
    %v707 = vunpack.c.l.b16 %v675
    %v708 = vunpack.c.l.b16 %v676
    %v709 = vunpack.c.l.b16 %v677
    %v710 = vunpack.c.l.b16 %v678
    %v711 = vunpack.c.l.b16 %v679
    %v712 = vunpack.c.l.b16 %v680
    %v713 = vunpack.c.l.b16 %v681
    %v714 = vunpack.c.l.b16 %v682
    %v715 = vunpack.c.l.b16 %v683
    %v716 = vunpack.c.l.b16 %v684
    %v717 = vunpack.c.l.b16 %v685
    %v718 = vunpack.c.l.b16 %v686
    %v719 = vunpack.c.l.b16 %v687
    %v720 = vunpack.c.l.b16 %v688
    %v721 = vunpack.c.l.b16 %v689
    %v722 = vpack.c.b16 %v707, %v706
    %v723 = vpack.c.b16 %v709, %v708
    %v724 = vpack.c.b16 %v711, %v710
    %v725 = vpack.c.b16 %v713, %v712
    %v726 = vpack.c.b16 %v715, %v714
    %v727 = vpack.c.b16 %v717, %v716
    %v728 = vpack.c.b16 %v719, %v718
    %v729 = vpack.c.b16 %v721, %v720
    %738 = vmatprep.subr.bf16.mxu0 0
    %739 = vmatpush1.bf16.msra.mxu0 %v729
    %740 = vmatprep.subr.bf16.mxu0 0
    %741 = vmatpush1.bf16.msra.mxu0 %v728
    %742 = vmatprep.subr.bf16.mxu0 0
    %743 = vmatpush1.bf16.msra.mxu0 %v727
    %744 = vmatprep.subr.bf16.mxu0 0
    %745 = vmatpush1.bf16.msra.mxu0 %v726
    %746 = vmatprep.subr.bf16.mxu0 0
    %747 = vmatpush1.bf16.msra.mxu0 %v725
    %748 = vmatprep.subr.bf16.mxu0 0
    %749 = vmatpush1.bf16.msra.mxu0 %v724
    %750 = vmatprep.subr.bf16.mxu0 0
    %751 = vmatpush1.bf16.msra.mxu0 %v723
    %752 = vmatprep.subr.bf16.mxu0 0
    %753 = vmatpush1.bf16.msra.mxu0 %v722
    %754 = vmatprep.subr.bf16.mxu0 0
    %755 = vmatpush2.bf16.msra.mxu0 0
    %756 = vmatprep.subr.bf16.mxu0 0
    %757 = vmatpush2.bf16.msra.mxu0 0
    %758 = vmatprep.subr.bf16.mxu0 0
    %759 = vmatpush2.bf16.msra.mxu0 0
    %760 = vmatprep.subr.bf16.mxu0 0
    %761 = vmatpush2.bf16.msra.mxu0 0
    %762 = vmatprep.subr.bf16.mxu0 0
    %763 = vmatpush2.bf16.msra.mxu0 0
    %764 = vmatprep.subr.bf16.mxu0 0
    %765 = vmatpush2.bf16.msra.mxu0 0
    %766 = vmatprep.subr.bf16.mxu0 0
    %767 = vmatpush2.bf16.msra.mxu0 0
    %768 = vmatprep.subr.bf16.mxu0 0
    %769 = vmatpush2.bf16.msra.mxu0 0
    %770 = vmatprep.mubr.bf16.mxu0 0
    %771 = vmatmul.mubr.bf16.gmra.mxu0 %v666
    %v772 = vpop.f32.mrf.mxu0
    %v773 = vadd.f32 0.0, %v772
    %v774 = vpop.f32.mrf.mxu0
    %v775 = vpop.f32.mrf.mxu0
    %v776 = vadd.f32 0.0, %v775
    %v777 = vpop.f32.mrf.mxu0
    %778 = vmatprep.mubr.bf16.mxu0 0
    %779 = vmatmul.mubr.bf16.gmra.mxu0 %v667
    %v780 = vpop.f32.mrf.mxu0
    %v781 = vadd.f32 0.0, %v780
    %v782 = vpop.f32.mrf.mxu0
    %v783 = vpop.f32.mrf.mxu0
    %v784 = vadd.f32 0.0, %v783
    %v785 = vpop.f32.mrf.mxu0
    %786 = vmatprep.mubr.bf16.mxu0 0
    %787 = vmatmul.mubr.bf16.gmra.mxu0 %v668
    %v788 = vpop.f32.mrf.mxu0
    %v789 = vadd.f32 0.0, %v788
    %v790 = vpop.f32.mrf.mxu0
    %v791 = vpop.f32.mrf.mxu0
    %v792 = vadd.f32 0.0, %v791
    %v793 = vpop.f32.mrf.mxu0
    %794 = vmatprep.mubr.bf16.mxu0 0
    %795 = vmatmul.mubr.bf16.gmra.mxu0 %v669
    %v796 = vpop.f32.mrf.mxu0
    %v797 = vadd.f32 0.0, %v796
    %v798 = vpop.f32.mrf.mxu0
    %v799 = vpop.f32.mrf.mxu0
    %v800 = vadd.f32 0.0, %v799
    %v801 = vpop.f32.mrf.mxu0
    %802 = vmatprep.mubr.bf16.mxu0 0
    %803 = vmatmul.mubr.bf16.gmra.mxu0 %v670
    %v804 = vpop.f32.mrf.mxu0
    %v805 = vadd.f32 0.0, %v804
    %v806 = vpop.f32.mrf.mxu0
    %v807 = vpop.f32.mrf.mxu0
    %v808 = vadd.f32 0.0, %v807
    %v809 = vpop.f32.mrf.mxu0
    %810 = vmatprep.mubr.bf16.mxu0 0
    %811 = vmatmul.mubr.bf16.gmra.mxu0 %v671
    %v812 = vpop.f32.mrf.mxu0
    %v813 = vadd.f32 0.0, %v812
    %v814 = vpop.f32.mrf.mxu0
    %v815 = vpop.f32.mrf.mxu0
    %v816 = vadd.f32 0.0, %v815
    %v817 = vpop.f32.mrf.mxu0
    %818 = vmatprep.mubr.bf16.mxu0 0
    %819 = vmatmul.mubr.bf16.gmra.mxu0 %v672
    %v820 = vpop.f32.mrf.mxu0
    %v821 = vadd.f32 0.0, %v820
    %v822 = vpop.f32.mrf.mxu0
    %v823 = vpop.f32.mrf.mxu0
    %v824 = vadd.f32 0.0, %v823
    %v825 = vpop.f32.mrf.mxu0
    %826 = vmatprep.mubr.bf16.mxu0 0
    %827 = vmatmul.mubr.bf16.gmra.mxu0 %v673
    %v828 = vpop.f32.mrf.mxu0
    %v829 = vadd.f32 0.0, %v828
    %v830 = vpop.f32.mrf.mxu0
    %v831 = vpop.f32.mrf.mxu0
    %v832 = vadd.f32 0.0, %v831
    %v833 = vpop.f32.mrf.mxu0
    %834 = vdwg.mxu0
    %v835 = vpack.c.bf16 %v776, %v773
    %v836 = vpack.c.bf16 %v784, %v781
    %v837 = vpack.c.bf16 %v792, %v789
    %v838 = vpack.c.bf16 %v800, %v797
    %v839 = vpack.c.bf16 %v808, %v805
    %v840 = vpack.c.bf16 %v816, %v813
    %v841 = vpack.c.bf16 %v824, %v821
    %v842 = vpack.c.bf16 %v832, %v829
    %843 = vmatprep.subr.bf16.mxu0 0
    %844 = vmatpush1.bf16.msra.mxu0 %v842
    %845 = vmatprep.subr.bf16.mxu0 0
    %846 = vmatpush1.bf16.msra.mxu0 %v841
    %847 = vmatprep.subr.bf16.mxu0 0
    %848 = vmatpush1.bf16.msra.mxu0 %v840
    %849 = vmatprep.subr.bf16.mxu0 0
    %850 = vmatpush1.bf16.msra.mxu0 %v839
    %851 = vmatprep.subr.bf16.mxu0 0
    %852 = vmatpush1.bf16.msra.mxu0 %v838
    %853 = vmatprep.subr.bf16.mxu0 0
    %854 = vmatpush1.bf16.msra.mxu0 %v837
    %855 = vmatprep.subr.bf16.mxu0 0
    %856 = vmatpush1.bf16.msra.mxu0 %v836
    %857 = vmatprep.subr.bf16.mxu0 0
    %858 = vmatpush1.bf16.msra.mxu0 %v835
    %859 = vmatprep.subr.bf16.mxu0 0
    %860 = vmatpush2.bf16.msra.mxu0 0
    %861 = vmatprep.subr.bf16.mxu0 0
    %862 = vmatpush2.bf16.msra.mxu0 0
    %863 = vmatprep.subr.bf16.mxu0 0
    %864 = vmatpush2.bf16.msra.mxu0 0
    %865 = vmatprep.subr.bf16.mxu0 0
    %866 = vmatpush2.bf16.msra.mxu0 0
    %867 = vmatprep.subr.bf16.mxu0 0
    %868 = vmatpush2.bf16.msra.mxu0 0
    %869 = vmatprep.subr.bf16.mxu0 0
    %870 = vmatpush2.bf16.msra.mxu0 0
    %871 = vmatprep.subr.bf16.mxu0 0
    %872 = vmatpush2.bf16.msra.mxu0 0
    %873 = vmatprep.subr.bf16.mxu0 0
    %874 = vmatpush2.bf16.msra.mxu0 0
    %875 = vmatprep.mubr.bf16.mxu0 0
    %876 = vmatmul.mubr.bf16.gmra.mxu0 %v425
    %v877 = vpop.f32.mrf.mxu0
    %v878 = vadd.f32 0.0, %v877
    %v879 = vpop.f32.mrf.mxu0
    %v880 = vpop.f32.mrf.mxu0
    %v881 = vadd.f32 0.0, %v880
    %v882 = vpop.f32.mrf.mxu0
    %883 = vmatprep.mubr.bf16.mxu0 0
    %884 = vmatmul.mubr.bf16.gmra.mxu0 %v426
    %v885 = vpop.f32.mrf.mxu0
    %v886 = vadd.f32 0.0, %v885
    %v887 = vpop.f32.mrf.mxu0
    %v888 = vpop.f32.mrf.mxu0
    %v889 = vadd.f32 0.0, %v888
    %v890 = vpop.f32.mrf.mxu0
    %891 = vmatprep.mubr.bf16.mxu0 0
    %892 = vmatmul.mubr.bf16.gmra.mxu0 %v427
    %v893 = vpop.f32.mrf.mxu0
    %v894 = vadd.f32 0.0, %v893
    %v895 = vpop.f32.mrf.mxu0
    %v896 = vpop.f32.mrf.mxu0
    %v897 = vadd.f32 0.0, %v896
    %v898 = vpop.f32.mrf.mxu0
    %899 = vmatprep.mubr.bf16.mxu0 0
    %900 = vmatmul.mubr.bf16.gmra.mxu0 %v428
    %v901 = vpop.f32.mrf.mxu0
    %v902 = vadd.f32 0.0, %v901
    %v903 = vpop.f32.mrf.mxu0
    %v904 = vpop.f32.mrf.mxu0
    %v905 = vadd.f32 0.0, %v904
    %v906 = vpop.f32.mrf.mxu0
    %907 = vmatprep.mubr.bf16.mxu0 0
    %908 = vmatmul.mubr.bf16.gmra.mxu0 %v429
    %v909 = vpop.f32.mrf.mxu0
    %v910 = vadd.f32 0.0, %v909
    %v911 = vpop.f32.mrf.mxu0
    %v912 = vpop.f32.mrf.mxu0
    %v913 = vadd.f32 0.0, %v912
    %v914 = vpop.f32.mrf.mxu0
    %915 = vmatprep.mubr.bf16.mxu0 0
    %916 = vmatmul.mubr.bf16.gmra.mxu0 %v430
    %v917 = vpop.f32.mrf.mxu0
    %v918 = vadd.f32 0.0, %v917
    %v919 = vpop.f32.mrf.mxu0
    %v920 = vpop.f32.mrf.mxu0
    %v921 = vadd.f32 0.0, %v920
    %v922 = vpop.f32.mrf.mxu0
    %923 = vmatprep.mubr.bf16.mxu0 0
    %924 = vmatmul.mubr.bf16.gmra.mxu0 %v431
    %v925 = vpop.f32.mrf.mxu0
    %v926 = vadd.f32 0.0, %v925
    %v927 = vpop.f32.mrf.mxu0
    %v928 = vpop.f32.mrf.mxu0
    %v929 = vadd.f32 0.0, %v928
    %v930 = vpop.f32.mrf.mxu0
    %931 = vmatprep.mubr.bf16.mxu0 0
    %932 = vmatmul.mubr.bf16.gmra.mxu0 %v432
    %v933 = vpop.f32.mrf.mxu0
    %v934 = vadd.f32 0.0, %v933
    %v935 = vpop.f32.mrf.mxu0
    %v936 = vpop.f32.mrf.mxu0
    %v937 = vadd.f32 0.0, %v936
    %v938 = vpop.f32.mrf.mxu0
    %939 = vdwg.mxu0
    %v940 = vadd.f32 %v878, %v881
    %v941 = vadd.f32 %v940, %v886
    %v942 = vadd.f32 %v941, %v889
    %v943 = vadd.f32 %v942, %v894
    %v944 = vadd.f32 %v943, %v897
    %v945 = vadd.f32 %v944, %v902
    %v946 = vadd.f32 %v945, %v905
    %v947 = vadd.f32 %v946, %v910
    %v948 = vadd.f32 %v947, %v913
    %v949 = vadd.f32 %v948, %v918
    %v950 = vadd.f32 %v949, %v921
    %v951 = vadd.f32 %v950, %v926
    %v952 = vadd.f32 %v951, %v929
    %v953 = vadd.f32 %v952, %v934
    %v954 = vadd.f32 %v953, %v937
    %v955 = vrot.slane %v954, 4
    %v956 = vadd.f32 %v954, %v955
    %v957 = vrot.slane %v956, 2
    %v958 = vadd.f32 %v956, %v957
    %v959 = vrot.slane %v958, 1
    %v960 = vadd.f32 %v958, %v959
    %v961 = vmul.f32 %v878, %v878
    %v962 = vmul.f32 %v881, %v881
    %v963 = vmul.f32 %v886, %v886
    %v964 = vmul.f32 %v889, %v889
    %v965 = vmul.f32 %v894, %v894
    %v966 = vmul.f32 %v897, %v897
    %v967 = vmul.f32 %v902, %v902
    %v968 = vmul.f32 %v905, %v905
    %v969 = vmul.f32 %v910, %v910
    %v970 = vmul.f32 %v913, %v913
    %v971 = vmul.f32 %v918, %v918
    %v972 = vmul.f32 %v921, %v921
    %v973 = vmul.f32 %v926, %v926
    %v974 = vmul.f32 %v929, %v929
    %v975 = vmul.f32 %v934, %v934
    %v976 = vmul.f32 %v937, %v937
    %v977 = vadd.f32 %v961, %v962
    %v978 = vadd.f32 %v977, %v963
    %v979 = vadd.f32 %v978, %v964
    %v980 = vadd.f32 %v979, %v965
    %v981 = vadd.f32 %v980, %v966
    %v982 = vadd.f32 %v981, %v967
    %v983 = vadd.f32 %v982, %v968
    %v984 = vadd.f32 %v983, %v969
    %v985 = vadd.f32 %v984, %v970
    %v986 = vadd.f32 %v985, %v971
    %v987 = vadd.f32 %v986, %v972
    %v988 = vadd.f32 %v987, %v973
    %v989 = vadd.f32 %v988, %v974
    %v990 = vadd.f32 %v989, %v975
    %v991 = vadd.f32 %v990, %v976
    %v992 = vrot.slane %v991, 4
    %v993 = vadd.f32 %v991, %v992
    %v994 = vrot.slane %v993, 2
    %v995 = vadd.f32 %v993, %v994
    %v996 = vrot.slane %v995, 1
    %v997 = vadd.f32 %v995, %v996
    %v998 = vmul.f32 %v960, 0.0625
    %v999 = vmul.f32 %v997, 0.0625
    %v1000 = vmul.f32 %v998, %v998
    %v1001 = vsub.f32 %v999, %v1000
    %v1002 = vmax.f32 %v1001, 0.0
    %v1003 = vadd.f32 %v1002, 1e-05
    %v1004 = vrsqrt.pop %v1003
    %v1005 = vld [vmem:[%s6] sm:$0x1]
    %v1006 = vmul.f32 %v1004, %v1005
    %v1007 = vld [vmem:[%s7] sm:$0x1]
    %v1008 = vmul.f32 %v998, %v1006
    %v1009 = vsub.f32 %v1007, %v1008
    %v1010 = vlaneseq
    %v1011 = vshrl.u32 %v1010, 7
    %v1012 = vsub.s32 0, %v1011
    %v1013 = vrot.slane %v1006, %v1012
    %v1014 = vmul.f32 %v878, %v1013
    %v1015 = vmul.f32 %v881, %v1013
    %v1016 = vmul.f32 %v886, %v1013
    %v1017 = vmul.f32 %v889, %v1013
    %v1018 = vmul.f32 %v894, %v1013
    %v1019 = vmul.f32 %v897, %v1013
    %v1020 = vmul.f32 %v902, %v1013
    %v1021 = vmul.f32 %v905, %v1013
    %v1022 = vmul.f32 %v910, %v1013
    %v1023 = vmul.f32 %v913, %v1013
    %v1024 = vmul.f32 %v918, %v1013
    %v1025 = vmul.f32 %v921, %v1013
    %v1026 = vmul.f32 %v926, %v1013
    %v1027 = vmul.f32 %v929, %v1013
    %v1028 = vmul.f32 %v934, %v1013
    %v1029 = vmul.f32 %v937, %v1013
    %v1031 = vlaneseq
    %v1032 = vshrl.u32 %v1031, 7
    %v1033 = vsub.s32 0, %v1032
    %v1034 = vrot.slane %v1009, %v1033
    %v1036 = vadd.f32 %v1014, %v1034
    %v1037 = vadd.f32 %v1015, %v1034
    %v1038 = vadd.f32 %v1016, %v1034
    %v1039 = vadd.f32 %v1017, %v1034
    %v1040 = vadd.f32 %v1018, %v1034
    %v1041 = vadd.f32 %v1019, %v1034
    %v1042 = vadd.f32 %v1020, %v1034
    %v1043 = vadd.f32 %v1021, %v1034
    %v1044 = vadd.f32 %v1022, %v1034
    %v1045 = vadd.f32 %v1023, %v1034
    %v1046 = vadd.f32 %v1024, %v1034
    %v1047 = vadd.f32 %v1025, %v1034
    %v1048 = vadd.f32 %v1026, %v1034
    %v1049 = vadd.f32 %v1027, %v1034
    %v1050 = vadd.f32 %v1028, %v1034
    %v1051 = vadd.f32 %v1029, %v1034
    %v1052 = vmax.f32 %v1036, 0.0
    %v1053 = vmax.f32 %v1037, 0.0
    %v1054 = vmax.f32 %v1038, 0.0
    %v1055 = vmax.f32 %v1039, 0.0
    %v1056 = vmax.f32 %v1040, 0.0
    %v1057 = vmax.f32 %v1041, 0.0
    %v1058 = vmax.f32 %v1042, 0.0
    %v1059 = vmax.f32 %v1043, 0.0
    %v1060 = vmax.f32 %v1044, 0.0
    %v1061 = vmax.f32 %v1045, 0.0
    %v1062 = vmax.f32 %v1046, 0.0
    %v1063 = vmax.f32 %v1047, 0.0
    %v1064 = vmax.f32 %v1048, 0.0
    %v1065 = vmax.f32 %v1049, 0.0
    %v1066 = vmax.f32 %v1050, 0.0
    %v1067 = vmax.f32 %v1051, 0.0
    %v1068 = vpack.c.bf16 %v1053, %v1052
    %v1069 = vpack.c.bf16 %v1055, %v1054
    %v1070 = vpack.c.bf16 %v1057, %v1056
    %v1071 = vpack.c.bf16 %v1059, %v1058
    %v1072 = vpack.c.bf16 %v1061, %v1060
    %v1073 = vpack.c.bf16 %v1063, %v1062
    %v1074 = vpack.c.bf16 %v1065, %v1064
    %v1075 = vpack.c.bf16 %v1067, %v1066
    %v1076 = vld [vmem:[#allocation10] sm:$0xf]
    %v1077 = vld [vmem:[#allocation10 + $0x4] sm:$0xf]
    %v1078 = vld [vmem:[#allocation10 + $0x8] sm:$0xf]
    %v1079 = vld [vmem:[#allocation10 + $0xc] sm:$0xf]
    %v1080 = vld [vmem:[#allocation10 + $0x10] sm:$0xf]
    %v1081 = vld [vmem:[#allocation10 + $0x14] sm:$0xf]
    %v1082 = vld [vmem:[#allocation10 + $0x18] sm:$0xf]
    %v1083 = vld [vmem:[#allocation10 + $0x1c] sm:$0xf]
    %v1084 = vld [vmem:[#allocation10 + $0x20] sm:$0xf]
    %v1085 = vld [vmem:[#allocation10 + $0x24] sm:$0xf]
    %v1086 = vld [vmem:[#allocation10 + $0x28] sm:$0xf]
    %v1087 = vld [vmem:[#allocation10 + $0x2c] sm:$0xf]
    %v1088 = vld [vmem:[#allocation10 + $0x30] sm:$0xf]
    %v1089 = vld [vmem:[#allocation10 + $0x34] sm:$0xf]
    %v1090 = vld [vmem:[#allocation10 + $0x38] sm:$0xf]
    %v1091 = vld [vmem:[#allocation10 + $0x3c] sm:$0xf]
    %v1108 = vunpack.c.l.b16 %v1076
    %v1109 = vunpack.c.l.b16 %v1077
    %v1110 = vunpack.c.l.b16 %v1078
    %v1111 = vunpack.c.l.b16 %v1079
    %v1112 = vunpack.c.l.b16 %v1080
    %v1113 = vunpack.c.l.b16 %v1081
    %v1114 = vunpack.c.l.b16 %v1082
    %v1115 = vunpack.c.l.b16 %v1083
    %v1116 = vunpack.c.l.b16 %v1084
    %v1117 = vunpack.c.l.b16 %v1085
    %v1118 = vunpack.c.l.b16 %v1086
    %v1119 = vunpack.c.l.b16 %v1087
    %v1120 = vunpack.c.l.b16 %v1088
    %v1121 = vunpack.c.l.b16 %v1089
    %v1122 = vunpack.c.l.b16 %v1090
    %v1123 = vunpack.c.l.b16 %v1091
    %v1124 = vpack.c.b16 %v1109, %v1108
    %v1125 = vpack.c.b16 %v1111, %v1110
    %v1126 = vpack.c.b16 %v1113, %v1112
    %v1127 = vpack.c.b16 %v1115, %v1114
    %v1128 = vpack.c.b16 %v1117, %v1116
    %v1129 = vpack.c.b16 %v1119, %v1118
    %v1130 = vpack.c.b16 %v1121, %v1120
    %v1131 = vpack.c.b16 %v1123, %v1122
    %1140 = vmatprep.subr.bf16.mxu0 0
    %1141 = vmatpush1.bf16.msra.mxu0 %v1131
    %1142 = vmatprep.subr.bf16.mxu0 0
    %1143 = vmatpush1.bf16.msra.mxu0 %v1130
    %1144 = vmatprep.subr.bf16.mxu0 0
    %1145 = vmatpush1.bf16.msra.mxu0 %v1129
    %1146 = vmatprep.subr.bf16.mxu0 0
    %1147 = vmatpush1.bf16.msra.mxu0 %v1128
    %1148 = vmatprep.subr.bf16.mxu0 0
    %1149 = vmatpush1.bf16.msra.mxu0 %v1127
    %1150 = vmatprep.subr.bf16.mxu0 0
    %1151 = vmatpush1.bf16.msra.mxu0 %v1126
    %1152 = vmatprep.subr.bf16.mxu0 0
    %1153 = vmatpush1.bf16.msra.mxu0 %v1125
    %1154 = vmatprep.subr.bf16.mxu0 0
    %1155 = vmatpush1.bf16.msra.mxu0 %v1124
    %1156 = vmatprep.subr.bf16.mxu0 0
    %1157 = vmatpush2.bf16.msra.mxu0 0
    %1158 = vmatprep.subr.bf16.mxu0 0
    %1159 = vmatpush2.bf16.msra.mxu0 0
    %1160 = vmatprep.subr.bf16.mxu0 0
    %1161 = vmatpush2.bf16.msra.mxu0 0
    %1162 = vmatprep.subr.bf16.mxu0 0
    %1163 = vmatpush2.bf16.msra.mxu0 0
    %1164 = vmatprep.subr.bf16.mxu0 0
    %1165 = vmatpush2.bf16.msra.mxu0 0
    %1166 = vmatprep.subr.bf16.mxu0 0
    %1167 = vmatpush2.bf16.msra.mxu0 0
    %1168 = vmatprep.subr.bf16.mxu0 0
    %1169 = vmatpush2.bf16.msra.mxu0 0
    %1170 = vmatprep.subr.bf16.mxu0 0
    %1171 = vmatpush2.bf16.msra.mxu0 0
    %1172 = vmatprep.mubr.bf16.mxu0 0
    %1173 = vmatmul.mubr.bf16.gmra.mxu0 %v1068
    %v1174 = vpop.f32.mrf.mxu0
    %v1175 = vadd.f32 0.0, %v1174
    %v1176 = vpop.f32.mrf.mxu0
    %v1177 = vpop.f32.mrf.mxu0
    %v1178 = vadd.f32 0.0, %v1177
    %v1179 = vpop.f32.mrf.mxu0
    %1180 = vmatprep.mubr.bf16.mxu0 0
    %1181 = vmatmul.mubr.bf16.gmra.mxu0 %v1069
    %v1182 = vpop.f32.mrf.mxu0
    %v1183 = vadd.f32 0.0, %v1182
    %v1184 = vpop.f32.mrf.mxu0
    %v1185 = vpop.f32.mrf.mxu0
    %v1186 = vadd.f32 0.0, %v1185
    %v1187 = vpop.f32.mrf.mxu0
    %1188 = vmatprep.mubr.bf16.mxu0 0
    %1189 = vmatmul.mubr.bf16.gmra.mxu0 %v1070
    %v1190 = vpop.f32.mrf.mxu0
    %v1191 = vadd.f32 0.0, %v1190
    %v1192 = vpop.f32.mrf.mxu0
    %v1193 = vpop.f32.mrf.mxu0
    %v1194 = vadd.f32 0.0, %v1193
    %v1195 = vpop.f32.mrf.mxu0
    %1196 = vmatprep.mubr.bf16.mxu0 0
    %1197 = vmatmul.mubr.bf16.gmra.mxu0 %v1071
    %v1198 = vpop.f32.mrf.mxu0
    %v1199 = vadd.f32 0.0, %v1198
    %v1200 = vpop.f32.mrf.mxu0
    %v1201 = vpop.f32.mrf.mxu0
    %v1202 = vadd.f32 0.0, %v1201
    %v1203 = vpop.f32.mrf.mxu0
    %1204 = vmatprep.mubr.bf16.mxu0 0
    %1205 = vmatmul.mubr.bf16.gmra.mxu0 %v1072
    %v1206 = vpop.f32.mrf.mxu0
    %v1207 = vadd.f32 0.0, %v1206
    %v1208 = vpop.f32.mrf.mxu0
    %v1209 = vpop.f32.mrf.mxu0
    %v1210 = vadd.f32 0.0, %v1209
    %v1211 = vpop.f32.mrf.mxu0
    %1212 = vmatprep.mubr.bf16.mxu0 0
    %1213 = vmatmul.mubr.bf16.gmra.mxu0 %v1073
    %v1214 = vpop.f32.mrf.mxu0
    %v1215 = vadd.f32 0.0, %v1214
    %v1216 = vpop.f32.mrf.mxu0
    %v1217 = vpop.f32.mrf.mxu0
    %v1218 = vadd.f32 0.0, %v1217
    %v1219 = vpop.f32.mrf.mxu0
    %1220 = vmatprep.mubr.bf16.mxu0 0
    %1221 = vmatmul.mubr.bf16.gmra.mxu0 %v1074
    %v1222 = vpop.f32.mrf.mxu0
    %v1223 = vadd.f32 0.0, %v1222
    %v1224 = vpop.f32.mrf.mxu0
    %v1225 = vpop.f32.mrf.mxu0
    %v1226 = vadd.f32 0.0, %v1225
    %v1227 = vpop.f32.mrf.mxu0
    %1228 = vmatprep.mubr.bf16.mxu0 0
    %1229 = vmatmul.mubr.bf16.gmra.mxu0 %v1075
    %v1230 = vpop.f32.mrf.mxu0
    %v1231 = vadd.f32 0.0, %v1230
    %v1232 = vpop.f32.mrf.mxu0
    %v1233 = vpop.f32.mrf.mxu0
    %v1234 = vadd.f32 0.0, %v1233
    %v1235 = vpop.f32.mrf.mxu0
    %1236 = vdwg.mxu0
    %v1237 = vpack.c.bf16 %v1178, %v1175
    %v1238 = vpack.c.bf16 %v1186, %v1183
    %v1239 = vpack.c.bf16 %v1194, %v1191
    %v1240 = vpack.c.bf16 %v1202, %v1199
    %v1241 = vpack.c.bf16 %v1210, %v1207
    %v1242 = vpack.c.bf16 %v1218, %v1215
    %v1243 = vpack.c.bf16 %v1226, %v1223
    %v1244 = vpack.c.bf16 %v1234, %v1231
    %1245 = vmatprep.subr.bf16.mxu0 0
    %1246 = vmatpush1.bf16.msra.mxu0 %v1244
    %1247 = vmatprep.subr.bf16.mxu0 0
    %1248 = vmatpush1.bf16.msra.mxu0 %v1243
    %1249 = vmatprep.subr.bf16.mxu0 0
    %1250 = vmatpush1.bf16.msra.mxu0 %v1242
    %1251 = vmatprep.subr.bf16.mxu0 0
    %1252 = vmatpush1.bf16.msra.mxu0 %v1241
    %1253 = vmatprep.subr.bf16.mxu0 0
    %1254 = vmatpush1.bf16.msra.mxu0 %v1240
    %1255 = vmatprep.subr.bf16.mxu0 0
    %1256 = vmatpush1.bf16.msra.mxu0 %v1239
    %1257 = vmatprep.subr.bf16.mxu0 0
    %1258 = vmatpush1.bf16.msra.mxu0 %v1238
    %1259 = vmatprep.subr.bf16.mxu0 0
    %1260 = vmatpush1.bf16.msra.mxu0 %v1237
    %1261 = vmatprep.subr.bf16.mxu0 0
    %1262 = vmatpush2.bf16.msra.mxu0 0
    %1263 = vmatprep.subr.bf16.mxu0 0
    %1264 = vmatpush2.bf16.msra.mxu0 0
    %1265 = vmatprep.subr.bf16.mxu0 0
    %1266 = vmatpush2.bf16.msra.mxu0 0
    %1267 = vmatprep.subr.bf16.mxu0 0
    %1268 = vmatpush2.bf16.msra.mxu0 0
    %1269 = vmatprep.subr.bf16.mxu0 0
    %1270 = vmatpush2.bf16.msra.mxu0 0
    %1271 = vmatprep.subr.bf16.mxu0 0
    %1272 = vmatpush2.bf16.msra.mxu0 0
    %1273 = vmatprep.subr.bf16.mxu0 0
    %1274 = vmatpush2.bf16.msra.mxu0 0
    %1275 = vmatprep.subr.bf16.mxu0 0
    %1276 = vmatpush2.bf16.msra.mxu0 0
    %1277 = vmatprep.mubr.bf16.mxu0 0
    %1278 = vmatmul.mubr.bf16.gmra.mxu0 %v425
    %v1279 = vpop.f32.mrf.mxu0
    %v1280 = vadd.f32 0.0, %v1279
    %v1281 = vpop.f32.mrf.mxu0
    %v1282 = vpop.f32.mrf.mxu0
    %v1283 = vadd.f32 0.0, %v1282
    %v1284 = vpop.f32.mrf.mxu0
    %1285 = vmatprep.mubr.bf16.mxu0 0
    %1286 = vmatmul.mubr.bf16.gmra.mxu0 %v426
    %v1287 = vpop.f32.mrf.mxu0
    %v1288 = vadd.f32 0.0, %v1287
    %v1289 = vpop.f32.mrf.mxu0
    %v1290 = vpop.f32.mrf.mxu0
    %v1291 = vadd.f32 0.0, %v1290
    %v1292 = vpop.f32.mrf.mxu0
    %1293 = vmatprep.mubr.bf16.mxu0 0
    %1294 = vmatmul.mubr.bf16.gmra.mxu0 %v427
    %v1295 = vpop.f32.mrf.mxu0
    %v1296 = vadd.f32 0.0, %v1295
    %v1297 = vpop.f32.mrf.mxu0
    %v1298 = vpop.f32.mrf.mxu0
    %v1299 = vadd.f32 0.0, %v1298
    %v1300 = vpop.f32.mrf.mxu0
    %1301 = vmatprep.mubr.bf16.mxu0 0
    %1302 = vmatmul.mubr.bf16.gmra.mxu0 %v428
    %v1303 = vpop.f32.mrf.mxu0
    %v1304 = vadd.f32 0.0, %v1303
    %v1305 = vpop.f32.mrf.mxu0
    %v1306 = vpop.f32.mrf.mxu0
    %v1307 = vadd.f32 0.0, %v1306
    %v1308 = vpop.f32.mrf.mxu0
    %1309 = vmatprep.mubr.bf16.mxu0 0
    %1310 = vmatmul.mubr.bf16.gmra.mxu0 %v429
    %v1311 = vpop.f32.mrf.mxu0
    %v1312 = vadd.f32 0.0, %v1311
    %v1313 = vpop.f32.mrf.mxu0
    %v1314 = vpop.f32.mrf.mxu0
    %v1315 = vadd.f32 0.0, %v1314
    %v1316 = vpop.f32.mrf.mxu0
    %1317 = vmatprep.mubr.bf16.mxu0 0
    %1318 = vmatmul.mubr.bf16.gmra.mxu0 %v430
    %v1319 = vpop.f32.mrf.mxu0
    %v1320 = vadd.f32 0.0, %v1319
    %v1321 = vpop.f32.mrf.mxu0
    %v1322 = vpop.f32.mrf.mxu0
    %v1323 = vadd.f32 0.0, %v1322
    %v1324 = vpop.f32.mrf.mxu0
    %1325 = vmatprep.mubr.bf16.mxu0 0
    %1326 = vmatmul.mubr.bf16.gmra.mxu0 %v431
    %v1327 = vpop.f32.mrf.mxu0
    %v1328 = vadd.f32 0.0, %v1327
    %v1329 = vpop.f32.mrf.mxu0
    %v1330 = vpop.f32.mrf.mxu0
    %v1331 = vadd.f32 0.0, %v1330
    %v1332 = vpop.f32.mrf.mxu0
    %1333 = vmatprep.mubr.bf16.mxu0 0
    %1334 = vmatmul.mubr.bf16.gmra.mxu0 %v432
    %v1335 = vpop.f32.mrf.mxu0
    %v1336 = vadd.f32 0.0, %v1335
    %v1337 = vpop.f32.mrf.mxu0
    %v1338 = vpop.f32.mrf.mxu0
    %v1339 = vadd.f32 0.0, %v1338
    %v1340 = vpop.f32.mrf.mxu0
    %1341 = vdwg.mxu0
    %v1342 = vadd.f32 %v1280, %v1283
    %v1343 = vadd.f32 %v1342, %v1288
    %v1344 = vadd.f32 %v1343, %v1291
    %v1345 = vadd.f32 %v1344, %v1296
    %v1346 = vadd.f32 %v1345, %v1299
    %v1347 = vadd.f32 %v1346, %v1304
    %v1348 = vadd.f32 %v1347, %v1307
    %v1349 = vadd.f32 %v1348, %v1312
    %v1350 = vadd.f32 %v1349, %v1315
    %v1351 = vadd.f32 %v1350, %v1320
    %v1352 = vadd.f32 %v1351, %v1323
    %v1353 = vadd.f32 %v1352, %v1328
    %v1354 = vadd.f32 %v1353, %v1331
    %v1355 = vadd.f32 %v1354, %v1336
    %v1356 = vadd.f32 %v1355, %v1339
    %v1357 = vrot.slane %v1356, 4
    %v1358 = vadd.f32 %v1356, %v1357
    %v1359 = vrot.slane %v1358, 2
    %v1360 = vadd.f32 %v1358, %v1359
    %v1361 = vrot.slane %v1360, 1
    %v1362 = vadd.f32 %v1360, %v1361
    %v1363 = vmul.f32 %v1280, %v1280
    %v1364 = vmul.f32 %v1283, %v1283
    %v1365 = vmul.f32 %v1288, %v1288
    %v1366 = vmul.f32 %v1291, %v1291
    %v1367 = vmul.f32 %v1296, %v1296
    %v1368 = vmul.f32 %v1299, %v1299
    %v1369 = vmul.f32 %v1304, %v1304
    %v1370 = vmul.f32 %v1307, %v1307
    %v1371 = vmul.f32 %v1312, %v1312
    %v1372 = vmul.f32 %v1315, %v1315
    %v1373 = vmul.f32 %v1320, %v1320
    %v1374 = vmul.f32 %v1323, %v1323
    %v1375 = vmul.f32 %v1328, %v1328
    %v1376 = vmul.f32 %v1331, %v1331
    %v1377 = vmul.f32 %v1336, %v1336
    %v1378 = vmul.f32 %v1339, %v1339
    %v1379 = vadd.f32 %v1363, %v1364
    %v1380 = vadd.f32 %v1379, %v1365
    %v1381 = vadd.f32 %v1380, %v1366
    %v1382 = vadd.f32 %v1381, %v1367
    %v1383 = vadd.f32 %v1382, %v1368
    %v1384 = vadd.f32 %v1383, %v1369
    %v1385 = vadd.f32 %v1384, %v1370
    %v1386 = vadd.f32 %v1385, %v1371
    %v1387 = vadd.f32 %v1386, %v1372
    %v1388 = vadd.f32 %v1387, %v1373
    %v1389 = vadd.f32 %v1388, %v1374
    %v1390 = vadd.f32 %v1389, %v1375
    %v1391 = vadd.f32 %v1390, %v1376
    %v1392 = vadd.f32 %v1391, %v1377
    %v1393 = vadd.f32 %v1392, %v1378
    %v1394 = vrot.slane %v1393, 4
    %v1395 = vadd.f32 %v1393, %v1394
    %v1396 = vrot.slane %v1395, 2
    %v1397 = vadd.f32 %v1395, %v1396
    %v1398 = vrot.slane %v1397, 1
    %v1399 = vadd.f32 %v1397, %v1398
    %v1400 = vmul.f32 %v1362, 0.0625
    %v1401 = vmul.f32 %v1399, 0.0625
    %v1402 = vmul.f32 %v1400, %v1400
    %v1403 = vsub.f32 %v1401, %v1402
    %v1404 = vmax.f32 %v1403, 0.0
    %v1405 = vadd.f32 %v1404, 1e-05
    %v1406 = vrsqrt.pop %v1405
    %v1407 = vld [vmem:[%s9] sm:$0x1]
    %v1408 = vmul.f32 %v1406, %v1407
    %v1409 = vld [vmem:[%s10] sm:$0x1]
    %v1410 = vmul.f32 %v1400, %v1408
    %v1411 = vsub.f32 %v1409, %v1410
    %v1412 = vlaneseq
    %v1413 = vshrl.u32 %v1412, 7
    %v1414 = vsub.s32 0, %v1413
    %v1415 = vrot.slane %v1408, %v1414
    %v1416 = vmul.f32 %v1280, %v1415
    %v1417 = vmul.f32 %v1283, %v1415
    %v1418 = vmul.f32 %v1288, %v1415
    %v1419 = vmul.f32 %v1291, %v1415
    %v1420 = vmul.f32 %v1296, %v1415
    %v1421 = vmul.f32 %v1299, %v1415
    %v1422 = vmul.f32 %v1304, %v1415
    %v1423 = vmul.f32 %v1307, %v1415
    %v1424 = vmul.f32 %v1312, %v1415
    %v1425 = vmul.f32 %v1315, %v1415
    %v1426 = vmul.f32 %v1320, %v1415
    %v1427 = vmul.f32 %v1323, %v1415
    %v1428 = vmul.f32 %v1328, %v1415
    %v1429 = vmul.f32 %v1331, %v1415
    %v1430 = vmul.f32 %v1336, %v1415
    %v1431 = vmul.f32 %v1339, %v1415
    %v1433 = vlaneseq
    %v1434 = vshrl.u32 %v1433, 7
    %v1435 = vsub.s32 0, %v1434
    %v1436 = vrot.slane %v1411, %v1435
    %v1438 = vadd.f32 %v1416, %v1436
    %v1439 = vadd.f32 %v1417, %v1436
    %v1440 = vadd.f32 %v1418, %v1436
    %v1441 = vadd.f32 %v1419, %v1436
    %v1442 = vadd.f32 %v1420, %v1436
    %v1443 = vadd.f32 %v1421, %v1436
    %v1444 = vadd.f32 %v1422, %v1436
    %v1445 = vadd.f32 %v1423, %v1436
    %v1446 = vadd.f32 %v1424, %v1436
    %v1447 = vadd.f32 %v1425, %v1436
    %v1448 = vadd.f32 %v1426, %v1436
    %v1449 = vadd.f32 %v1427, %v1436
    %v1450 = vadd.f32 %v1428, %v1436
    %v1451 = vadd.f32 %v1429, %v1436
    %v1452 = vadd.f32 %v1430, %v1436
    %v1453 = vadd.f32 %v1431, %v1436
    %v1454 = vmax.f32 %v1438, 0.0
    %v1455 = vmax.f32 %v1439, 0.0
    %v1456 = vmax.f32 %v1440, 0.0
    %v1457 = vmax.f32 %v1441, 0.0
    %v1458 = vmax.f32 %v1442, 0.0
    %v1459 = vmax.f32 %v1443, 0.0
    %v1460 = vmax.f32 %v1444, 0.0
    %v1461 = vmax.f32 %v1445, 0.0
    %v1462 = vmax.f32 %v1446, 0.0
    %v1463 = vmax.f32 %v1447, 0.0
    %v1464 = vmax.f32 %v1448, 0.0
    %v1465 = vmax.f32 %v1449, 0.0
    %v1466 = vmax.f32 %v1450, 0.0
    %v1467 = vmax.f32 %v1451, 0.0
    %v1468 = vmax.f32 %v1452, 0.0
    %v1469 = vmax.f32 %v1453, 0.0
    %v1470 = vpack.c.bf16 %v1455, %v1454
    %v1471 = vpack.c.bf16 %v1457, %v1456
    %v1472 = vpack.c.bf16 %v1459, %v1458
    %v1473 = vpack.c.bf16 %v1461, %v1460
    %v1474 = vpack.c.bf16 %v1463, %v1462
    %v1475 = vpack.c.bf16 %v1465, %v1464
    %v1476 = vpack.c.bf16 %v1467, %v1466
    %v1477 = vpack.c.bf16 %v1469, %v1468
    %v1478 = vld [vmem:[#allocation11] sm:$0xf]
    %v1479 = vld [vmem:[#allocation11 + $0x4] sm:$0xf]
    %v1480 = vld [vmem:[#allocation11 + $0x8] sm:$0xf]
    %v1481 = vld [vmem:[#allocation11 + $0xc] sm:$0xf]
    %v1482 = vld [vmem:[#allocation11 + $0x10] sm:$0xf]
    %v1483 = vld [vmem:[#allocation11 + $0x14] sm:$0xf]
    %v1484 = vld [vmem:[#allocation11 + $0x18] sm:$0xf]
    %v1485 = vld [vmem:[#allocation11 + $0x1c] sm:$0xf]
    %v1486 = vld [vmem:[#allocation11 + $0x20] sm:$0xf]
    %v1487 = vld [vmem:[#allocation11 + $0x24] sm:$0xf]
    %v1488 = vld [vmem:[#allocation11 + $0x28] sm:$0xf]
    %v1489 = vld [vmem:[#allocation11 + $0x2c] sm:$0xf]
    %v1490 = vld [vmem:[#allocation11 + $0x30] sm:$0xf]
    %v1491 = vld [vmem:[#allocation11 + $0x34] sm:$0xf]
    %v1492 = vld [vmem:[#allocation11 + $0x38] sm:$0xf]
    %v1493 = vld [vmem:[#allocation11 + $0x3c] sm:$0xf]
    %v1510 = vunpack.c.l.b16 %v1478
    %v1511 = vunpack.c.l.b16 %v1479
    %v1512 = vunpack.c.l.b16 %v1480
    %v1513 = vunpack.c.l.b16 %v1481
    %v1514 = vunpack.c.l.b16 %v1482
    %v1515 = vunpack.c.l.b16 %v1483
    %v1516 = vunpack.c.l.b16 %v1484
    %v1517 = vunpack.c.l.b16 %v1485
    %v1518 = vunpack.c.l.b16 %v1486
    %v1519 = vunpack.c.l.b16 %v1487
    %v1520 = vunpack.c.l.b16 %v1488
    %v1521 = vunpack.c.l.b16 %v1489
    %v1522 = vunpack.c.l.b16 %v1490
    %v1523 = vunpack.c.l.b16 %v1491
    %v1524 = vunpack.c.l.b16 %v1492
    %v1525 = vunpack.c.l.b16 %v1493
    %v1526 = vpack.c.b16 %v1511, %v1510
    %v1527 = vpack.c.b16 %v1513, %v1512
    %v1528 = vpack.c.b16 %v1515, %v1514
    %v1529 = vpack.c.b16 %v1517, %v1516
    %v1530 = vpack.c.b16 %v1519, %v1518
    %v1531 = vpack.c.b16 %v1521, %v1520
    %v1532 = vpack.c.b16 %v1523, %v1522
    %v1533 = vpack.c.b16 %v1525, %v1524
    %1542 = vmatprep.subr.bf16.mxu0 0
    %1543 = vmatpush1.bf16.msra.mxu0 %v1533
    %1544 = vmatprep.subr.bf16.mxu0 0
    %1545 = vmatpush1.bf16.msra.mxu0 %v1532
    %1546 = vmatprep.subr.bf16.mxu0 0
    %1547 = vmatpush1.bf16.msra.mxu0 %v1531
    %1548 = vmatprep.subr.bf16.mxu0 0
    %1549 = vmatpush1.bf16.msra.mxu0 %v1530
    %1550 = vmatprep.subr.bf16.mxu0 0
    %1551 = vmatpush1.bf16.msra.mxu0 %v1529
    %1552 = vmatprep.subr.bf16.mxu0 0
    %1553 = vmatpush1.bf16.msra.mxu0 %v1528
    %1554 = vmatprep.subr.bf16.mxu0 0
    %1555 = vmatpush1.bf16.msra.mxu0 %v1527
    %1556 = vmatprep.subr.bf16.mxu0 0
    %1557 = vmatpush1.bf16.msra.mxu0 %v1526
    %1558 = vmatprep.subr.bf16.mxu0 0
    %1559 = vmatpush2.bf16.msra.mxu0 0
    %1560 = vmatprep.subr.bf16.mxu0 0
    %1561 = vmatpush2.bf16.msra.mxu0 0
    %1562 = vmatprep.subr.bf16.mxu0 0
    %1563 = vmatpush2.bf16.msra.mxu0 0
    %1564 = vmatprep.subr.bf16.mxu0 0
    %1565 = vmatpush2.bf16.msra.mxu0 0
    %1566 = vmatprep.subr.bf16.mxu0 0
    %1567 = vmatpush2.bf16.msra.mxu0 0
    %1568 = vmatprep.subr.bf16.mxu0 0
    %1569 = vmatpush2.bf16.msra.mxu0 0
    %1570 = vmatprep.subr.bf16.mxu0 0
    %1571 = vmatpush2.bf16.msra.mxu0 0
    %1572 = vmatprep.subr.bf16.mxu0 0
    %1573 = vmatpush2.bf16.msra.mxu0 0
    %1574 = vmatprep.mubr.bf16.mxu0 0
    %1575 = vmatmul.mubr.bf16.gmra.mxu0 %v1470
    %v1576 = vpop.f32.mrf.mxu0
    %v1577 = vadd.f32 0.0, %v1576
    %v1578 = vpop.f32.mrf.mxu0
    %v1579 = vpop.f32.mrf.mxu0
    %v1580 = vadd.f32 0.0, %v1579
    %v1581 = vpop.f32.mrf.mxu0
    %1582 = vmatprep.mubr.bf16.mxu0 0
    %1583 = vmatmul.mubr.bf16.gmra.mxu0 %v1471
    %v1584 = vpop.f32.mrf.mxu0
    %v1585 = vadd.f32 0.0, %v1584
    %v1586 = vpop.f32.mrf.mxu0
    %v1587 = vpop.f32.mrf.mxu0
    %v1588 = vadd.f32 0.0, %v1587
    %v1589 = vpop.f32.mrf.mxu0
    %1590 = vmatprep.mubr.bf16.mxu0 0
    %1591 = vmatmul.mubr.bf16.gmra.mxu0 %v1472
    %v1592 = vpop.f32.mrf.mxu0
    %v1593 = vadd.f32 0.0, %v1592
    %v1594 = vpop.f32.mrf.mxu0
    %v1595 = vpop.f32.mrf.mxu0
    %v1596 = vadd.f32 0.0, %v1595
    %v1597 = vpop.f32.mrf.mxu0
    %1598 = vmatprep.mubr.bf16.mxu0 0
    %1599 = vmatmul.mubr.bf16.gmra.mxu0 %v1473
    %v1600 = vpop.f32.mrf.mxu0
    %v1601 = vadd.f32 0.0, %v1600
    %v1602 = vpop.f32.mrf.mxu0
    %v1603 = vpop.f32.mrf.mxu0
    %v1604 = vadd.f32 0.0, %v1603
    %v1605 = vpop.f32.mrf.mxu0
    %1606 = vmatprep.mubr.bf16.mxu0 0
    %1607 = vmatmul.mubr.bf16.gmra.mxu0 %v1474
    %v1608 = vpop.f32.mrf.mxu0
    %v1609 = vadd.f32 0.0, %v1608
    %v1610 = vpop.f32.mrf.mxu0
    %v1611 = vpop.f32.mrf.mxu0
    %v1612 = vadd.f32 0.0, %v1611
    %v1613 = vpop.f32.mrf.mxu0
    %1614 = vmatprep.mubr.bf16.mxu0 0
    %1615 = vmatmul.mubr.bf16.gmra.mxu0 %v1475
    %v1616 = vpop.f32.mrf.mxu0
    %v1617 = vadd.f32 0.0, %v1616
    %v1618 = vpop.f32.mrf.mxu0
    %v1619 = vpop.f32.mrf.mxu0
    %v1620 = vadd.f32 0.0, %v1619
    %v1621 = vpop.f32.mrf.mxu0
    %1622 = vmatprep.mubr.bf16.mxu0 0
    %1623 = vmatmul.mubr.bf16.gmra.mxu0 %v1476
    %v1624 = vpop.f32.mrf.mxu0
    %v1625 = vadd.f32 0.0, %v1624
    %v1626 = vpop.f32.mrf.mxu0
    %v1627 = vpop.f32.mrf.mxu0
    %v1628 = vadd.f32 0.0, %v1627
    %v1629 = vpop.f32.mrf.mxu0
    %1630 = vmatprep.mubr.bf16.mxu0 0
    %1631 = vmatmul.mubr.bf16.gmra.mxu0 %v1477
    %v1632 = vpop.f32.mrf.mxu0
    %v1633 = vadd.f32 0.0, %v1632
    %v1634 = vpop.f32.mrf.mxu0
    %v1635 = vpop.f32.mrf.mxu0
    %v1636 = vadd.f32 0.0, %v1635
    %v1637 = vpop.f32.mrf.mxu0
    %1638 = vdwg.mxu0
    %v1639 = vpack.c.bf16 %v1580, %v1577
    %v1640 = vpack.c.bf16 %v1588, %v1585
    %v1641 = vpack.c.bf16 %v1596, %v1593
    %v1642 = vpack.c.bf16 %v1604, %v1601
    %v1643 = vpack.c.bf16 %v1612, %v1609
    %v1644 = vpack.c.bf16 %v1620, %v1617
    %v1645 = vpack.c.bf16 %v1628, %v1625
    %v1646 = vpack.c.bf16 %v1636, %v1633
    %1647 = vmatprep.subr.bf16.mxu0 0
    %1648 = vmatpush1.bf16.msra.mxu0 %v1646
    %1649 = vmatprep.subr.bf16.mxu0 0
    %1650 = vmatpush1.bf16.msra.mxu0 %v1645
    %1651 = vmatprep.subr.bf16.mxu0 0
    %1652 = vmatpush1.bf16.msra.mxu0 %v1644
    %1653 = vmatprep.subr.bf16.mxu0 0
    %1654 = vmatpush1.bf16.msra.mxu0 %v1643
    %1655 = vmatprep.subr.bf16.mxu0 0
    %1656 = vmatpush1.bf16.msra.mxu0 %v1642
    %1657 = vmatprep.subr.bf16.mxu0 0
    %1658 = vmatpush1.bf16.msra.mxu0 %v1641
    %1659 = vmatprep.subr.bf16.mxu0 0
    %1660 = vmatpush1.bf16.msra.mxu0 %v1640
    %1661 = vmatprep.subr.bf16.mxu0 0
    %1662 = vmatpush1.bf16.msra.mxu0 %v1639
    %1663 = vmatprep.subr.bf16.mxu0 0
    %1664 = vmatpush2.bf16.msra.mxu0 0
    %1665 = vmatprep.subr.bf16.mxu0 0
    %1666 = vmatpush2.bf16.msra.mxu0 0
    %1667 = vmatprep.subr.bf16.mxu0 0
    %1668 = vmatpush2.bf16.msra.mxu0 0
    %1669 = vmatprep.subr.bf16.mxu0 0
    %1670 = vmatpush2.bf16.msra.mxu0 0
    %1671 = vmatprep.subr.bf16.mxu0 0
    %1672 = vmatpush2.bf16.msra.mxu0 0
    %1673 = vmatprep.subr.bf16.mxu0 0
    %1674 = vmatpush2.bf16.msra.mxu0 0
    %1675 = vmatprep.subr.bf16.mxu0 0
    %1676 = vmatpush2.bf16.msra.mxu0 0
    %1677 = vmatprep.subr.bf16.mxu0 0
    %1678 = vmatpush2.bf16.msra.mxu0 0
    %1679 = vmatprep.mubr.bf16.mxu0 0
    %1680 = vmatmul.mubr.bf16.gmra.mxu0 %v425
    %v1681 = vpop.f32.mrf.mxu0
    %v1682 = vadd.f32 0.0, %v1681
    %v1683 = vpop.f32.mrf.mxu0
    %v1684 = vpop.f32.mrf.mxu0
    %v1685 = vadd.f32 0.0, %v1684
    %v1686 = vpop.f32.mrf.mxu0
    %1687 = vmatprep.mubr.bf16.mxu0 0
    %1688 = vmatmul.mubr.bf16.gmra.mxu0 %v426
    %v1689 = vpop.f32.mrf.mxu0
    %v1690 = vadd.f32 0.0, %v1689
    %v1691 = vpop.f32.mrf.mxu0
    %v1692 = vpop.f32.mrf.mxu0
    %v1693 = vadd.f32 0.0, %v1692
    %v1694 = vpop.f32.mrf.mxu0
    %1695 = vmatprep.mubr.bf16.mxu0 0
    %1696 = vmatmul.mubr.bf16.gmra.mxu0 %v427
    %v1697 = vpop.f32.mrf.mxu0
    %v1698 = vadd.f32 0.0, %v1697
    %v1699 = vpop.f32.mrf.mxu0
    %v1700 = vpop.f32.mrf.mxu0
    %v1701 = vadd.f32 0.0, %v1700
    %v1702 = vpop.f32.mrf.mxu0
    %1703 = vmatprep.mubr.bf16.mxu0 0
    %1704 = vmatmul.mubr.bf16.gmra.mxu0 %v428
    %v1705 = vpop.f32.mrf.mxu0
    %v1706 = vadd.f32 0.0, %v1705
    %v1707 = vpop.f32.mrf.mxu0
    %v1708 = vpop.f32.mrf.mxu0
    %v1709 = vadd.f32 0.0, %v1708
    %v1710 = vpop.f32.mrf.mxu0
    %1711 = vmatprep.mubr.bf16.mxu0 0
    %1712 = vmatmul.mubr.bf16.gmra.mxu0 %v429
    %v1713 = vpop.f32.mrf.mxu0
    %v1714 = vadd.f32 0.0, %v1713
    %v1715 = vpop.f32.mrf.mxu0
    %v1716 = vpop.f32.mrf.mxu0
    %v1717 = vadd.f32 0.0, %v1716
    %v1718 = vpop.f32.mrf.mxu0
    %1719 = vmatprep.mubr.bf16.mxu0 0
    %1720 = vmatmul.mubr.bf16.gmra.mxu0 %v430
    %v1721 = vpop.f32.mrf.mxu0
    %v1722 = vadd.f32 0.0, %v1721
    %v1723 = vpop.f32.mrf.mxu0
    %v1724 = vpop.f32.mrf.mxu0
    %v1725 = vadd.f32 0.0, %v1724
    %v1726 = vpop.f32.mrf.mxu0
    %1727 = vmatprep.mubr.bf16.mxu0 0
    %1728 = vmatmul.mubr.bf16.gmra.mxu0 %v431
    %v1729 = vpop.f32.mrf.mxu0
    %v1730 = vadd.f32 0.0, %v1729
    %v1731 = vpop.f32.mrf.mxu0
    %v1732 = vpop.f32.mrf.mxu0
    %v1733 = vadd.f32 0.0, %v1732
    %v1734 = vpop.f32.mrf.mxu0
    %1735 = vmatprep.mubr.bf16.mxu0 0
    %1736 = vmatmul.mubr.bf16.gmra.mxu0 %v432
    %v1737 = vpop.f32.mrf.mxu0
    %v1738 = vadd.f32 0.0, %v1737
    %v1739 = vpop.f32.mrf.mxu0
    %v1740 = vpop.f32.mrf.mxu0
    %v1741 = vadd.f32 0.0, %v1740
    %v1742 = vpop.f32.mrf.mxu0
    %1743 = vdwg.mxu0
    %v1744 = vadd.f32 %v1682, %v1685
    %v1745 = vadd.f32 %v1744, %v1690
    %v1746 = vadd.f32 %v1745, %v1693
    %v1747 = vadd.f32 %v1746, %v1698
    %v1748 = vadd.f32 %v1747, %v1701
    %v1749 = vadd.f32 %v1748, %v1706
    %v1750 = vadd.f32 %v1749, %v1709
    %v1751 = vadd.f32 %v1750, %v1714
    %v1752 = vadd.f32 %v1751, %v1717
    %v1753 = vadd.f32 %v1752, %v1722
    %v1754 = vadd.f32 %v1753, %v1725
    %v1755 = vadd.f32 %v1754, %v1730
    %v1756 = vadd.f32 %v1755, %v1733
    %v1757 = vadd.f32 %v1756, %v1738
    %v1758 = vadd.f32 %v1757, %v1741
    %v1759 = vrot.slane %v1758, 4
    %v1760 = vadd.f32 %v1758, %v1759
    %v1761 = vrot.slane %v1760, 2
    %v1762 = vadd.f32 %v1760, %v1761
    %v1763 = vrot.slane %v1762, 1
    %v1764 = vadd.f32 %v1762, %v1763
    %v1765 = vmul.f32 %v1682, %v1682
    %v1766 = vmul.f32 %v1685, %v1685
    %v1767 = vmul.f32 %v1690, %v1690
    %v1768 = vmul.f32 %v1693, %v1693
    %v1769 = vmul.f32 %v1698, %v1698
    %v1770 = vmul.f32 %v1701, %v1701
    %v1771 = vmul.f32 %v1706, %v1706
    %v1772 = vmul.f32 %v1709, %v1709
    %v1773 = vmul.f32 %v1714, %v1714
    %v1774 = vmul.f32 %v1717, %v1717
    %v1775 = vmul.f32 %v1722, %v1722
    %v1776 = vmul.f32 %v1725, %v1725
    %v1777 = vmul.f32 %v1730, %v1730
    %v1778 = vmul.f32 %v1733, %v1733
    %v1779 = vmul.f32 %v1738, %v1738
    %v1780 = vmul.f32 %v1741, %v1741
    %v1781 = vadd.f32 %v1765, %v1766
    %v1782 = vadd.f32 %v1781, %v1767
    %v1783 = vadd.f32 %v1782, %v1768
    %v1784 = vadd.f32 %v1783, %v1769
    %v1785 = vadd.f32 %v1784, %v1770
    %v1786 = vadd.f32 %v1785, %v1771
    %v1787 = vadd.f32 %v1786, %v1772
    %v1788 = vadd.f32 %v1787, %v1773
    %v1789 = vadd.f32 %v1788, %v1774
    %v1790 = vadd.f32 %v1789, %v1775
    %v1791 = vadd.f32 %v1790, %v1776
    %v1792 = vadd.f32 %v1791, %v1777
    %v1793 = vadd.f32 %v1792, %v1778
    %v1794 = vadd.f32 %v1793, %v1779
    %v1795 = vadd.f32 %v1794, %v1780
    %v1796 = vrot.slane %v1795, 4
    %v1797 = vadd.f32 %v1795, %v1796
    %v1798 = vrot.slane %v1797, 2
    %v1799 = vadd.f32 %v1797, %v1798
    %v1800 = vrot.slane %v1799, 1
    %v1801 = vadd.f32 %v1799, %v1800
    %v1802 = vmul.f32 %v1764, 0.0625
    %v1803 = vmul.f32 %v1801, 0.0625
    %v1804 = vmul.f32 %v1802, %v1802
    %v1805 = vsub.f32 %v1803, %v1804
    %v1806 = vmax.f32 %v1805, 0.0
    %v1807 = vadd.f32 %v1806, 1e-05
    %v1808 = vrsqrt.pop %v1807
    %v1809 = vsub.f32 %v1682, %v1802
    %v1810 = vsub.f32 %v1685, %v1802
    %v1811 = vsub.f32 %v1690, %v1802
    %v1812 = vsub.f32 %v1693, %v1802
    %v1813 = vsub.f32 %v1698, %v1802
    %v1814 = vsub.f32 %v1701, %v1802
    %v1815 = vsub.f32 %v1706, %v1802
    %v1816 = vsub.f32 %v1709, %v1802
    %v1817 = vsub.f32 %v1714, %v1802
    %v1818 = vsub.f32 %v1717, %v1802
    %v1819 = vsub.f32 %v1722, %v1802
    %v1820 = vsub.f32 %v1725, %v1802
    %v1821 = vsub.f32 %v1730, %v1802
    %v1822 = vsub.f32 %v1733, %v1802
    %v1823 = vsub.f32 %v1738, %v1802
    %v1824 = vsub.f32 %v1741, %v1802
    %v1825 = vmul.f32 %v1809, %v1808
    %v1826 = vmul.f32 %v1810, %v1808
    %v1827 = vmul.f32 %v1811, %v1808
    %v1828 = vmul.f32 %v1812, %v1808
    %v1829 = vmul.f32 %v1813, %v1808
    %v1830 = vmul.f32 %v1814, %v1808
    %v1831 = vmul.f32 %v1815, %v1808
    %v1832 = vmul.f32 %v1816, %v1808
    %v1833 = vmul.f32 %v1817, %v1808
    %v1834 = vmul.f32 %v1818, %v1808
    %v1835 = vmul.f32 %v1819, %v1808
    %v1836 = vmul.f32 %v1820, %v1808
    %v1837 = vmul.f32 %v1821, %v1808
    %v1838 = vmul.f32 %v1822, %v1808
    %v1839 = vmul.f32 %v1823, %v1808
    %v1840 = vmul.f32 %v1824, %v1808
    %v1841 = vpack.c.bf16 %v1826, %v1825
    %v1842 = vpack.c.bf16 %v1828, %v1827
    %v1843 = vpack.c.bf16 %v1830, %v1829
    %v1844 = vpack.c.bf16 %v1832, %v1831
    %v1845 = vpack.c.bf16 %v1834, %v1833
    %v1846 = vpack.c.bf16 %v1836, %v1835
    %v1847 = vpack.c.bf16 %v1838, %v1837
    %v1848 = vpack.c.bf16 %v1840, %v1839
    %v1849 = vld [vmem:[#allocation13] sm:$0xf]
    %v1850 = vld [vmem:[#allocation13 + $0x4] sm:$0xf]
    %v1851 = vld [vmem:[#allocation13 + $0x8] sm:$0xf]
    %v1852 = vld [vmem:[#allocation13 + $0xc] sm:$0xf]
    %v1853 = vld [vmem:[#allocation13 + $0x10] sm:$0xf]
    %v1854 = vld [vmem:[#allocation13 + $0x14] sm:$0xf]
    %v1855 = vld [vmem:[#allocation13 + $0x18] sm:$0xf]
    %v1856 = vld [vmem:[#allocation13 + $0x1c] sm:$0xf]
    %v1857 = vld [vmem:[#allocation13 + $0x20] sm:$0xf]
    %v1858 = vld [vmem:[#allocation13 + $0x24] sm:$0xf]
    %v1859 = vld [vmem:[#allocation13 + $0x28] sm:$0xf]
    %v1860 = vld [vmem:[#allocation13 + $0x2c] sm:$0xf]
    %v1861 = vld [vmem:[#allocation13 + $0x30] sm:$0xf]
    %v1862 = vld [vmem:[#allocation13 + $0x34] sm:$0xf]
    %v1863 = vld [vmem:[#allocation13 + $0x38] sm:$0xf]
    %v1864 = vld [vmem:[#allocation13 + $0x3c] sm:$0xf]
    %v1865 = vld [vmem:[%s13] sm:$0x1]
    %v1867 = vlaneseq
    %v1868 = vshrl.u32 %v1867, 7
    %v1869 = vsub.s32 0, %v1868
    %v1870 = vrot.slane %v1865, %v1869
    %v1888 = vunpack.c.l.b16 %v1849
    %v1889 = vunpack.c.l.b16 %v1850
    %v1890 = vunpack.c.l.b16 %v1851
    %v1891 = vunpack.c.l.b16 %v1852
    %v1892 = vunpack.c.l.b16 %v1853
    %v1893 = vunpack.c.l.b16 %v1854
    %v1894 = vunpack.c.l.b16 %v1855
    %v1895 = vunpack.c.l.b16 %v1856
    %v1896 = vunpack.c.l.b16 %v1857
    %v1897 = vunpack.c.l.b16 %v1858
    %v1898 = vunpack.c.l.b16 %v1859
    %v1899 = vunpack.c.l.b16 %v1860
    %v1900 = vunpack.c.l.b16 %v1861
    %v1901 = vunpack.c.l.b16 %v1862
    %v1902 = vunpack.c.l.b16 %v1863
    %v1903 = vunpack.c.l.b16 %v1864
    %v1904 = vpack.c.b16 %v1889, %v1888
    %v1905 = vpack.c.b16 %v1891, %v1890
    %v1906 = vpack.c.b16 %v1893, %v1892
    %v1907 = vpack.c.b16 %v1895, %v1894
    %v1908 = vpack.c.b16 %v1897, %v1896
    %v1909 = vpack.c.b16 %v1899, %v1898
    %v1910 = vpack.c.b16 %v1901, %v1900
    %v1911 = vpack.c.b16 %v1903, %v1902
    %1920 = vmatprep.subr.bf16.mxu0 0
    %1921 = vmatpush1.bf16.msra.mxu0 %v1911
    %1922 = vmatprep.subr.bf16.mxu0 0
    %1923 = vmatpush1.bf16.msra.mxu0 %v1910
    %1924 = vmatprep.subr.bf16.mxu0 0
    %1925 = vmatpush1.bf16.msra.mxu0 %v1909
    %1926 = vmatprep.subr.bf16.mxu0 0
    %1927 = vmatpush1.bf16.msra.mxu0 %v1908
    %1928 = vmatprep.subr.bf16.mxu0 0
    %1929 = vmatpush1.bf16.msra.mxu0 %v1907
    %1930 = vmatprep.subr.bf16.mxu0 0
    %1931 = vmatpush1.bf16.msra.mxu0 %v1906
    %1932 = vmatprep.subr.bf16.mxu0 0
    %1933 = vmatpush1.bf16.msra.mxu0 %v1905
    %1934 = vmatprep.subr.bf16.mxu0 0
    %1935 = vmatpush1.bf16.msra.mxu0 %v1904
    %1936 = vmatprep.subr.bf16.mxu0 0
    %1937 = vmatpush2.bf16.msra.mxu0 0
    %1938 = vmatprep.subr.bf16.mxu0 0
    %1939 = vmatpush2.bf16.msra.mxu0 0
    %1940 = vmatprep.subr.bf16.mxu0 0
    %1941 = vmatpush2.bf16.msra.mxu0 0
    %1942 = vmatprep.subr.bf16.mxu0 0
    %1943 = vmatpush2.bf16.msra.mxu0 0
    %1944 = vmatprep.subr.bf16.mxu0 0
    %1945 = vmatpush2.bf16.msra.mxu0 0
    %1946 = vmatprep.subr.bf16.mxu0 0
    %1947 = vmatpush2.bf16.msra.mxu0 0
    %1948 = vmatprep.subr.bf16.mxu0 0
    %1949 = vmatpush2.bf16.msra.mxu0 0
    %1950 = vmatprep.subr.bf16.mxu0 0
    %1951 = vmatpush2.bf16.msra.mxu0 0
    %1952 = vmatprep.mubr.bf16.mxu0 0
    %1953 = vmatmul.mubr.bf16.gmra.mxu0 %v1841
    %v1954 = vpop.f32.mrf.mxu0
    %v1955 = vadd.f32 %v1870, %v1954
    %v1956 = vpop.f32.mrf.mxu0
    %v1957 = vpop.f32.mrf.mxu0
    %v1958 = vadd.f32 %v1870, %v1957
    %v1959 = vpop.f32.mrf.mxu0
    %1960 = vmatprep.mubr.bf16.mxu0 0
    %1961 = vmatmul.mubr.bf16.gmra.mxu0 %v1842
    %v1962 = vpop.f32.mrf.mxu0
    %v1963 = vadd.f32 %v1870, %v1962
    %v1964 = vpop.f32.mrf.mxu0
    %v1965 = vpop.f32.mrf.mxu0
    %v1966 = vadd.f32 %v1870, %v1965
    %v1967 = vpop.f32.mrf.mxu0
    %1968 = vmatprep.mubr.bf16.mxu0 0
    %1969 = vmatmul.mubr.bf16.gmra.mxu0 %v1843
    %v1970 = vpop.f32.mrf.mxu0
    %v1971 = vadd.f32 %v1870, %v1970
    %v1972 = vpop.f32.mrf.mxu0
    %v1973 = vpop.f32.mrf.mxu0
    %v1974 = vadd.f32 %v1870, %v1973
    %v1975 = vpop.f32.mrf.mxu0
    %1976 = vmatprep.mubr.bf16.mxu0 0
    %1977 = vmatmul.mubr.bf16.gmra.mxu0 %v1844
    %v1978 = vpop.f32.mrf.mxu0
    %v1979 = vadd.f32 %v1870, %v1978
    %v1980 = vpop.f32.mrf.mxu0
    %v1981 = vpop.f32.mrf.mxu0
    %v1982 = vadd.f32 %v1870, %v1981
    %v1983 = vpop.f32.mrf.mxu0
    %1984 = vmatprep.mubr.bf16.mxu0 0
    %1985 = vmatmul.mubr.bf16.gmra.mxu0 %v1845
    %v1986 = vpop.f32.mrf.mxu0
    %v1987 = vadd.f32 %v1870, %v1986
    %v1988 = vpop.f32.mrf.mxu0
    %v1989 = vpop.f32.mrf.mxu0
    %v1990 = vadd.f32 %v1870, %v1989
    %v1991 = vpop.f32.mrf.mxu0
    %1992 = vmatprep.mubr.bf16.mxu0 0
    %1993 = vmatmul.mubr.bf16.gmra.mxu0 %v1846
    %v1994 = vpop.f32.mrf.mxu0
    %v1995 = vadd.f32 %v1870, %v1994
    %v1996 = vpop.f32.mrf.mxu0
    %v1997 = vpop.f32.mrf.mxu0
    %v1998 = vadd.f32 %v1870, %v1997
    %v1999 = vpop.f32.mrf.mxu0
    %2000 = vmatprep.mubr.bf16.mxu0 0
    %2001 = vmatmul.mubr.bf16.gmra.mxu0 %v1847
    %v2002 = vpop.f32.mrf.mxu0
    %v2003 = vadd.f32 %v1870, %v2002
    %v2004 = vpop.f32.mrf.mxu0
    %v2005 = vpop.f32.mrf.mxu0
    %v2006 = vadd.f32 %v1870, %v2005
    %v2007 = vpop.f32.mrf.mxu0
    %2008 = vmatprep.mubr.bf16.mxu0 0
    %2009 = vmatmul.mubr.bf16.gmra.mxu0 %v1848
    %v2010 = vpop.f32.mrf.mxu0
    %v2011 = vadd.f32 %v1870, %v2010
    %v2012 = vpop.f32.mrf.mxu0
    %v2013 = vpop.f32.mrf.mxu0
    %v2014 = vadd.f32 %v1870, %v2013
    %v2015 = vpop.f32.mrf.mxu0
    %2016 = vdwg.mxu0
    %2017 = vst [vmem:[#allocation14] sm:$0xff] %v1955
    %2018 = vst [vmem:[#allocation14 + $0x8] sm:$0xff] %v1958
    %2019 = vst [vmem:[#allocation14 + $0x10] sm:$0xff] %v1963
    %2020 = vst [vmem:[#allocation14 + $0x18] sm:$0xff] %v1966
    %2021 = vst [vmem:[#allocation14 + $0x20] sm:$0xff] %v1971
    %2022 = vst [vmem:[#allocation14 + $0x28] sm:$0xff] %v1974
    %2023 = vst [vmem:[#allocation14 + $0x30] sm:$0xff] %v1979
    %2024 = vst [vmem:[#allocation14 + $0x38] sm:$0xff] %v1982
    %2025 = vst [vmem:[#allocation14 + $0x40] sm:$0xff] %v1987
    %2026 = vst [vmem:[#allocation14 + $0x48] sm:$0xff] %v1990
    %2027 = vst [vmem:[#allocation14 + $0x50] sm:$0xff] %v1995
    %2028 = vst [vmem:[#allocation14 + $0x58] sm:$0xff] %v1998
    %2029 = vst [vmem:[#allocation14 + $0x60] sm:$0xff] %v2003
    %2030 = vst [vmem:[#allocation14 + $0x68] sm:$0xff] %v2006
    %2031 = vst [vmem:[#allocation14 + $0x70] sm:$0xff] %v2011
    %2032 = vst [vmem:[#allocation14 + $0x78] sm:$0xff] %v2014
    // Predicated region
    $region86: #{tpu_custom_call.1} parent=1 // pred_check
      _
    $region87: #{tpu_custom_call.1} parent=1 // pred_check_branch
      %2034 = sbr.rel (0) target = $region89
    $region88: #{tpu_custom_call.1} parent=1 // pred_region
      %s2036 = ssub.s32 2048, 2048
      %2037 = vsyncadd [#allocation4], %s2036
      %s2038 = sshll.u32 [#allocation14], 4
      %s2039 = int_to_ptr.vmem [resolvable:$true] %s2038
      %2044 = dma.vmem_to_hbm [thread:$0]  %s2039, 2048, %s14, [#allocation4], 128, 128, 8
    $region89: #{tpu_custom_call.1} parent=1 // pred_fallthru
      _
    // Predicated region
    $region90: #{tpu_custom_call.1} parent=1 // pred_check
      _
    $region91: #{tpu_custom_call.1} parent=1 // pred_check_branch
      %2046 = sbr.rel (0) target = $region93
    $region92: #{tpu_custom_call.1} parent=1 // pred_region
      %2047 = dma.done [#allocation4], 2048
    $region93: #{tpu_custom_call.1} parent=1 // pred_fallthru
      _
    %2048 = vsyncpa [#allocation3], 1
    %2049 = vsyncpa [#allocation6], 1
    %2050 = vsyncpa [#allocation9], 1
    %2051 = vsyncpa [#allocation12], 1
    %2052 = vsyncpa [#allocation4], 1

</llo_original>
